<compile_context>
chip_gen: v6e
topology: v6e:2x2x1
jax: 0.10.0
libtpu: 0.0.40
codegen_flags: <defaults>
</compile_context>

<pallas_src>
import numpy as np
import jax
import jax.numpy as jnp
from jax.experimental import pallas as pl
from jax.experimental.pallas import tpu as pltpu

EPS = 1e-5


# --------------------- host-side grouped-conv planning ------------------------

def _plan_group_conv(G, Cq, a_order=None):
    """Plan the E-slab for a grouped 3x3 conv with 2 input channels per group.

    E has 2*Cq rows: row r (< Cq) holds the FIRST input of group G[r], row
    Cq+r the SECOND input.  Inputs come from stream a (cat channels < Cq) or
    stream b (>= Cq).  Returns (a_order, b_order, pieces):
      * a_order/b_order: stored channel order of each source stream (row i of
        the stored slab holds original channel order[i]).  If a_order is None
        it is chosen so the E rows sourced from a are contiguous runs.
      * pieces: list of (src, start, stop) s.t. E = concat(src_slab[start:stop]).
    The conv output, computed as z[:Cq] + z[Cq:], comes out in stored order G.
    """
    seq = []
    for r in range(2 * Cq):
        ch = 2 * G[r % Cq] + (r // Cq)
        seq.append((0, ch) if ch < Cq else (1, ch - Cq))
    orders = [list(a_order) if a_order is not None else None, None]
    for src in (0, 1):
        if orders[src] is None:
            orders[src] = [c for (s, c) in seq if s == src]      # scan order
    inv = [{c: i for i, c in enumerate(orders[src])} for src in (0, 1)]
    rows = [(s, inv[s][c]) for (s, c) in seq]
    pieces, i = [], 0
    while i < len(rows):
        s0, r0 = rows[i]
        j = i + 1
        while j < len(rows) and rows[j][0] == s0 and rows[j][1] == rows[j - 1][1] + 1:
            j += 1
        pieces.append((s0, r0, rows[j - 1][1] + 1))
        i = j
    return orders[0], orders[1], pieces


# ----------------------------- fused kernel ----------------------------------

def _make_fused_kernel(H, W, Cin, Cq, Co, Bt, pieces2, pieces3):
    HW = H * W
    C2 = 4 * Cq

    def kernel(x_ref, w0_ref, taps_ref, shifts_ref, w4_ref, fc_ref, masks_ref, o_ref):
        w0 = w0_ref[...]                       # (C2, Cin)   sc1-folded, row-permuted
        w4 = w4_ref[...]                       # (Co, C2)    sc5/shuffle folded, col-permuted
        taps = taps_ref[...]                   # (5*Cq, 9)   BN-scale folded tap weights
        masks = masks_ref[...]                 # (9, HW)     per-tap validity (row+col+wrap)

        sh1 = shifts_ref[0:C2]
        sh2 = shifts_ref[C2:C2 + Cq]
        sh3 = shifts_ref[C2 + Cq:C2 + 2 * Cq]
        sh4 = shifts_ref[C2 + 2 * Cq:C2 + 3 * Cq]
        sh5 = shifts_ref[C2 + 3 * Cq:C2 + 3 * Cq + Co]

        fc1t = fc_ref[0:Cin]                   # (Cin, Ch)
        fc2 = fc_ref[Cin:Cin + Co]             # (Co, Ch)   shuffle-folded rows

        tw1 = taps[0:Cq]                       # conv1 (depthwise)
        tw2 = taps[Cq:3 * Cq]                  # conv2 E-slab
        tw3 = taps[3 * Cq:5 * Cq]              # conv3 E-slab

        def dw3x3(slab, tw):
            # 3x3 depthwise conv as 9 lane-rolled FMAs; BN scale already in tw.
            acc = slab * tw[:, 4:5]                              # center tap (no roll/mask)
            for kh in range(3):
                for kw in range(3):
                    t = kh * 3 + kw
                    if t == 4:
                        continue
                    s = (kh - 1) * W + (kw - 1)
                    r = pltpu.roll(slab, shift=(-s) % HW, axis=1)  # XLU rotate
                    acc = acc + (r * masks[t:t + 1, :]) * tw[:, t:t + 1]
            return acc

        def gather(srcs, pieces):
            return jnp.concatenate([srcs[s][a:b] for (s, a, b) in pieces], axis=0)

        for bi in range(Bt):
            x = x_ref[bi]                                        # (Cin, HW)

            # conv0 (1x1, sc1 folded) + bn1 shift + relu
            x1 = jnp.maximum(
                jnp.dot(w0, x, preferred_element_type=jnp.float32) + sh1, 0.0)

            y1 = x1[0:Cq]
            y2s = x1[Cq:2 * Cq]
            y3s = x1[2 * Cq:3 * Cq]
            y4s = x1[3 * Cq:4 * Cq]

            # conv1 (depthwise 3x3) + bn2 + relu
            y2n = jnp.maximum(dw3x3(y2s, tw1) + sh2, 0.0)

            # conv2 (grouped 3x3, 2 in-ch/group) as E-slab depthwise + pair sum
            e2 = gather((y2n, y3s), pieces2)
            z2 = dw3x3(e2, tw2)
            y3n = jnp.maximum(z2[0:Cq] + z2[Cq:2 * Cq] + sh3, 0.0)

            # conv3 (grouped 3x3, 2 in-ch/group)
            e3 = gather((y3n, y4s), pieces3)
            z3 = dw3x3(e3, tw3)
            y4n = jnp.maximum(z3[0:Cq] + z3[Cq:2 * Cq] + sh4, 0.0)

            # conv4 (1x1; sc5, channel_shuffle and stored-order folds in w4)
            cat = jnp.concatenate([y1, y2n, y3n, y4n], axis=0)   # (C2, HW)
            y = jnp.maximum(
                jnp.dot(w4, cat, preferred_element_type=jnp.float32) + sh5, 0.0)

            # SE gate (global max pool of the module input; VPU/XLU/EUP only)
            v = jnp.max(x, axis=1, keepdims=True)                            # (Cin, 1)
            h = jnp.maximum(jnp.sum(fc1t * v, axis=0, keepdims=True), 0.0)   # (1, Ch)
            logits = jnp.sum(fc2 * h, axis=1, keepdims=True)                 # (Co, 1)
            gate = pl.reciprocal(1.0 + jnp.exp(-logits), approx=True)

            o_ref[bi] = y * gate

    return kernel


# ------------------------------- wrapper --------------------------------------

def _fold_bn(bn):
    gamma, beta, mean, var = bn
    sc = gamma / jnp.sqrt(var + EPS)
    sh = beta - mean * sc
    return sc.reshape(-1, 1).astype(jnp.float32), sh.reshape(-1, 1).astype(jnp.float32)


def fe_save_pallas(x_nchw, P, out_channels, batch_block=1):
    B, Cin, H, W = x_nchw.shape
    Co = out_channels
    C2 = 2 * Co
    Cq = C2 // 4
    HW = H * W
    Bt = batch_block
    assert B % Bt == 0, "batch_block must divide batch"

    x = x_nchw.reshape(B, Cin, HW).astype(jnp.float32)

    # ---- host-side, one-time parameter prep ---------------------------------
    sc1, sh1 = _fold_bn(P['bn1'])
    sc2, sh2 = _fold_bn(P['bn2'])
    sc3, sh3 = _fold_bn(P['bn3'])
    sc4, sh4 = _fold_bn(P['bn4'])
    sc5, sh5 = _fold_bn(P['bn5'])

    # Channel-order plan so all grouped-conv gathers are contiguous slabs.
    D = list(range(0, Cq, 2)) + list(range(1, Cq, 2))        # de-interleave
    G2 = D                                                   # conv2 output order
    G3 = list(range(Cq))                                     # conv3 output order
    O2, O3, pieces2 = _plan_group_conv(G2, Cq)               # conv2 inputs
    _, O4, pieces3 = _plan_group_conv(G3, Cq, a_order=G2)    # conv3 inputs

    O2a, O3a, O4a = np.array(O2), np.array(O3), np.array(O4)
    G2a, G3a = np.array(G2), np.array(G3)

    # conv0: fold sc1 into rows, then permute rows to the stored slice orders.
    row_perm = np.concatenate([np.arange(Cq), Cq + O2a, 2 * Cq + O3a, 3 * Cq + O4a])
    w0k = (P['conv0_w'][:, :, 0, 0].astype(jnp.float32) * sc1)[row_perm]
    sh1k = sh1[row_perm]

    # conv1 (depthwise): fold sc2, permute rows by O2 (input & output order O2).
    w1f = P['conv1_w'][:, 0].reshape(Cq, 9).astype(jnp.float32) * sc2
    tw1 = w1f[O2a]
    sh2k = sh2[O2a]

    # conv2 / conv3 E-slab tap weights (row r < Cq: first input of group G[r]).
    w2a = P['conv2_w'][:, 0].reshape(Cq, 9).astype(jnp.float32) * sc3
    w2b = P['conv2_w'][:, 1].reshape(Cq, 9).astype(jnp.float32) * sc3
    tw2 = jnp.concatenate([w2a[G2a], w2b[G2a]], axis=0)
    sh3k = sh3[G2a]

    w3a = P['conv3_w'][:, 0].reshape(Cq, 9).astype(jnp.float32) * sc4
    w3b = P['conv3_w'][:, 1].reshape(Cq, 9).astype(jnp.float32) * sc4
    tw3 = jnp.concatenate([w3a[G3a], w3b[G3a]], axis=0)
    sh4k = sh4[G3a]

    # conv4: fold sc5 + channel_shuffle(2) into rows, stored orders into columns.
    src = np.array([(o % 2) * (Co // 2) + o // 2 for o in range(Co)], dtype=np.int32)
    col_map = np.concatenate([np.arange(Cq), Cq + O2a, 2 * Cq + G2a, 3 * Cq + G3a])
    w4k = ((P['conv4_w'][:, :, 0, 0].astype(jnp.float32) * sc5)[src])[:, col_map]
    sh5k = sh5[src]

    fc1t = P['fc1_w'].T.astype(jnp.float32)                  # (Cin, Ch)
    fc2k = P['fc2_w'].astype(jnp.float32)[src]               # (Co, Ch), shuffled rows

    # Packed parameter slabs (fewer BlockSpecs / DMA descriptors).
    taps_all = jnp.concatenate([tw1, tw2, tw3], axis=0)                  # (5Cq, 9)
    shifts_all = jnp.concatenate([sh1k, sh2k, sh3k, sh4k, sh5k], axis=0)  # (C2+3Cq+Co, 1)
    fc_all = jnp.concatenate([fc1t, fc2k], axis=0)                       # (Cin+Co, Ch)

    # Per-tap validity masks (W boundary + H boundary, which also kills the
    # circular wrap of pltpu.roll across the flattened h*W+w axis).
    hh = np.arange(HW) // W
    ww = np.arange(HW) % W
    masks = np.stack(
        [(((hh + kh - 1) >= 0) & ((hh + kh - 1) < H) &
          ((ww + kw - 1) >= 0) & ((ww + kw - 1) < W)).astype(np.float32)
         for kh in range(3) for kw in range(3)], axis=0)
    masks = jnp.asarray(masks)                                            # (9, HW)

    kernel = _make_fused_kernel(H, W, Cin, Cq, Co, Bt, pieces2, pieces3)

    def const_spec(a):
        n = a.ndim
        return pl.BlockSpec(a.shape, lambda b, _n=n: (0,) * _n)

    out = pl.pallas_call(
        kernel,
        out_shape=jax.ShapeDtypeStruct((B, Co, HW), jnp.float32),
        grid=(B // Bt,),
        in_specs=[
            pl.BlockSpec((Bt, Cin, HW), lambda b: (b, 0, 0)),
            const_spec(w0k), const_spec(taps_all), const_spec(shifts_all),
            const_spec(w4k), const_spec(fc_all), const_spec(masks),
        ],
        out_specs=pl.BlockSpec((Bt, Co, HW), lambda b: (b, 0, 0)),
        compiler_params=pltpu.CompilerParams(dimension_semantics=("parallel",)),
    )(x, w0k, taps_all, shifts_all, w4k, fc_all, masks)

    return out.reshape(B, Co, H, W)                                       # already NCHW


# ----------------------- pure-JAX reference (NCHW) ----------------------------

def reference_forward(x_nchw, P, out_channels):
    Co = out_channels
    C2 = 2 * Co
    Cq = C2 // 4
    relu = lambda z: jnp.maximum(z, 0.0)

    def bn(x, params):
        g, b, m, v = params
        return ((x - m[None, :, None, None]) / jnp.sqrt(v + EPS)[None, :, None, None]
                * g[None, :, None, None] + b[None, :, None, None])

    def conv(x, w, padv, groups=1):
        return jax.lax.conv_general_dilated(
            x, w, (1, 1), ((padv, padv), (padv, padv)),
            feature_group_count=groups,
            dimension_numbers=('NCHW', 'OIHW', 'NCHW'),
            precision=jax.lax.Precision.HIGHEST)

    x1 = relu(bn(conv(x_nchw, P['conv0_w'], 0), P['bn1']))
    y1, y2, y3, y4 = (x1[:, :Cq], x1[:, Cq:2 * Cq], x1[:, 2 * Cq:3 * Cq], x1[:, 3 * Cq:])
    y2 = relu(bn(conv(y2, P['conv1_w'], 1, groups=Cq), P['bn2']))
    y3 = relu(bn(conv(jnp.concatenate([y2, y3], axis=1), P['conv2_w'], 1, groups=Cq), P['bn3']))
    y4 = relu(bn(conv(jnp.concatenate([y3, y4], axis=1), P['conv3_w'], 1, groups=Cq), P['bn4']))
    y = relu(bn(conv(jnp.concatenate([y1, y2, y3, y4], axis=1), P['conv4_w'], 0), P['bn5']))

    v = jnp.max(x_nchw, axis=(2, 3))
    h = jnp.maximum(jnp.dot(v, P['fc1_w'].T, precision=jax.lax.Precision.HIGHEST), 0.0)
    gate = jax.nn.sigmoid(jnp.dot(h, P['fc2_w'].T, precision=jax.lax.Precision.HIGHEST))
    y = y * gate[:, :, None, None]

    B, C, H, W = y.shape
    y = y.reshape(B, 2, C // 2, H, W).transpose(0, 2, 1, 3, 4).reshape(B, C, H, W)
    return y


# ------------------------------- params ----------------------------------------

def init_params(key, inp_channels, out_channels):
    Co = out_channels
    C2 = 2 * Co
    Cq = C2 // 4
    Ch = max(1, Co // 9)
    ks = jax.random.split(key, 12)

    def w(k, shape, scale=0.2):
        return (scale * jax.random.normal(k, shape)).astype(jnp.float32)

    def bn_init(k, c):
        k1, k2, k3, k4 = jax.random.split(k, 4)
        gamma = (1.0 + 0.1 * jax.random.normal(k1, (c,))).astype(jnp.float32)
        beta = (0.1 * jax.random.normal(k2, (c,))).astype(jnp.float32)
        mean = (0.1 * jax.random.normal(k3, (c,))).astype(jnp.float32)
        var = (0.5 + jax.random.uniform(k4, (c,))).astype(jnp.float32)
        return gamma, beta, mean, var

    return {
        'conv0_w': w(ks[0], (C2, inp_channels, 1, 1)),
        'conv1_w': w(ks[1], (Cq, 1, 3, 3)),
        'conv2_w': w(ks[2], (Cq, 2, 3, 3)),
        'conv3_w': w(ks[3], (Cq, 2, 3, 3)),
        'conv4_w': w(ks[4], (Co, C2, 1, 1)),
        'fc1_w': w(ks[5], (Ch, Co)),
        'fc2_w': w(ks[6], (Co, Ch)),
        'bn1': bn_init(ks[7], C2),
        'bn2': bn_init(ks[8], Cq),
        'bn3': bn_init(ks[9], Cq),
        'bn4': bn_init(ks[10], Cq),
        'bn5': bn_init(ks[11], Co),
    }


# --------------------------------- main -----------------------------------------

if __name__ == "__main__":
    # SEBlock is built with `out_channels` but pools the module input `x`,
    # so the module only type-checks when inp_channels == out_channels.
    B, C, H, W = 2, 16, 16, 16
    inp_channels = out_channels = C

    key = jax.random.PRNGKey(0)
    kx, kp = jax.random.split(key)
    x = jax.random.normal(kx, (B, inp_channels, H, W), dtype=jnp.float32)
    P = init_params(kp, inp_channels, out_channels)

    # batch_block=1 -> grid=(B,) "parallel" (both v7x TCs busy for B>=2).
    # On single-TC v5e/v6e, batch_block=B amortizes per-grid-step overhead.
    out = jax.block_until_ready(fe_save_pallas(x, P, out_channels, batch_block=1))
    ref = jax.block_until_ready(reference_forward(x, P, out_channels))

    assert out.shape == (B, out_channels, H, W), out.shape
    np.testing.assert_allclose(np.asarray(out), np.asarray(ref), rtol=2e-2, atol=2e-3)
    print("KERNEL_OK")
</pallas_src>

<mosaic_0001>
module attributes {stable_mosaic.version = 11 : i64} {
  func.func @kernel(%arg0: i32, %arg1: memref<1x16x256xf32, #tpu.memory_space<vmem>>, %arg2: memref<32x16xf32, #tpu.memory_space<vmem>>, %arg3: memref<40x9xf32, #tpu.memory_space<vmem>>, %arg4: memref<72x1xf32, #tpu.memory_space<vmem>>, %arg5: memref<16x32xf32, #tpu.memory_space<vmem>>, %arg6: memref<32x1xf32, #tpu.memory_space<vmem>>, %arg7: memref<9x256xf32, #tpu.memory_space<vmem>>, %arg8: memref<1x16x256xf32, #tpu.memory_space<vmem>>) attributes {dimension_semantics = [#tpu.dimension_semantics<parallel>], iteration_bounds = array<i64: 2>, scalar_prefetch = 0 : i64, scratch_operands = 0 : i64, tpu.core_type = #tpu.core_type<tc>, window_params = [{transform_indices = @transform_0, window_bounds = array<i64: 1, 16, 256>}, {pipeline_mode = #tpu.pipeline_mode<synchronous>, transform_indices = @transform_1, window_bounds = array<i64: 32, 16>}, {pipeline_mode = #tpu.pipeline_mode<synchronous>, transform_indices = @transform_2, window_bounds = array<i64: 40, 9>}, {pipeline_mode = #tpu.pipeline_mode<synchronous>, transform_indices = @transform_3, window_bounds = array<i64: 72, 1>}, {pipeline_mode = #tpu.pipeline_mode<synchronous>, transform_indices = @transform_4, window_bounds = array<i64: 16, 32>}, {pipeline_mode = #tpu.pipeline_mode<synchronous>, transform_indices = @transform_5, window_bounds = array<i64: 32, 1>}, {pipeline_mode = #tpu.pipeline_mode<synchronous>, transform_indices = @transform_6, window_bounds = array<i64: 9, 256>}, {transform_indices = @transform_7, window_bounds = array<i64: 1, 16, 256>}]} {
    %c0 = arith.constant 0 : index
    %c0_0 = arith.constant 0 : index
    %0 = vector.load %arg2[%c0, %c0_0] : memref<32x16xf32, #tpu.memory_space<vmem>>, vector<32x16xf32>
    %c0_1 = arith.constant 0 : index
    %c0_2 = arith.constant 0 : index
    %1 = vector.load %arg5[%c0_1, %c0_2] : memref<16x32xf32, #tpu.memory_space<vmem>>, vector<16x32xf32>
    %c0_3 = arith.constant 0 : index
    %c0_4 = arith.constant 0 : index
    %2 = vector.load %arg3[%c0_3, %c0_4] : memref<40x9xf32, #tpu.memory_space<vmem>>, vector<40x9xf32>
    %c0_5 = arith.constant 0 : index
    %c0_6 = arith.constant 0 : index
    %3 = vector.load %arg7[%c0_5, %c0_6] : memref<9x256xf32, #tpu.memory_space<vmem>>, vector<9x256xf32>
    %c0_7 = arith.constant 0 : index
    %c0_8 = arith.constant 0 : index
    %4 = vector.load %arg4[%c0_7, %c0_8] : memref<72x1xf32, #tpu.memory_space<vmem>>, vector<32x1xf32>
    %c32 = arith.constant 32 : index
    %c0_9 = arith.constant 0 : index
    %5 = vector.load %arg4[%c32, %c0_9] : memref<72x1xf32, #tpu.memory_space<vmem>>, vector<8x1xf32>
    %c40 = arith.constant 40 : index
    %c0_10 = arith.constant 0 : index
    %6 = vector.load %arg4[%c40, %c0_10] : memref<72x1xf32, #tpu.memory_space<vmem>>, vector<8x1xf32>
    %c48 = arith.constant 48 : index
    %c0_11 = arith.constant 0 : index
    %7 = vector.load %arg4[%c48, %c0_11] : memref<72x1xf32, #tpu.memory_space<vmem>>, vector<8x1xf32>
    %c56 = arith.constant 56 : index
    %c0_12 = arith.constant 0 : index
    %8 = vector.load %arg4[%c56, %c0_12] : memref<72x1xf32, #tpu.memory_space<vmem>>, vector<16x1xf32>
    %c0_13 = arith.constant 0 : index
    %c0_14 = arith.constant 0 : index
    %9 = vector.load %arg6[%c0_13, %c0_14] : memref<32x1xf32, #tpu.memory_space<vmem>>, vector<16x1xf32>
    %c16 = arith.constant 16 : index
    %c0_15 = arith.constant 0 : index
    %10 = vector.load %arg6[%c16, %c0_15] : memref<32x1xf32, #tpu.memory_space<vmem>>, vector<16x1xf32>
    %11 = vector.extract_strided_slice %2 {offsets = [0, 0], sizes = [8, 9], strides = [1, 1]} : vector<40x9xf32> to vector<8x9xf32>
    %12 = vector.extract_strided_slice %2 {offsets = [8, 0], sizes = [16, 9], strides = [1, 1]} : vector<40x9xf32> to vector<16x9xf32>
    %13 = vector.extract_strided_slice %2 {offsets = [24, 0], sizes = [16, 9], strides = [1, 1]} : vector<40x9xf32> to vector<16x9xf32>
    %c0_16 = arith.constant 0 : index
    %c0_17 = arith.constant 0 : index
    %c0_18 = arith.constant 0 : index
    %14 = vector.load %arg1[%c0_16, %c0_17, %c0_18] : memref<1x16x256xf32, #tpu.memory_space<vmem>>, vector<1x16x256xf32>
    %15 = vector.shape_cast %14 : vector<1x16x256xf32> to vector<16x256xf32>
    %cst = arith.constant dense<0.000000e+00> : vector<32x256xf32>
    %16 = tpu.matmul %0, %15, %cst {dimension_numbers = #tpu.dot_dimension_numbers<[1], [0], [0], [1], [0, 0, 1, 1], [], []>} : vector<32x16xf32>, vector<16x256xf32>, vector<32x256xf32> -> vector<32x256xf32>
    %17 = vector.broadcast %4 : vector<32x1xf32> to vector<32x256xf32>
    %18 = arith.addf %16, %17 : vector<32x256xf32>
    %cst_19 = arith.constant 0.000000e+00 : f32
    %19 = vector.broadcast %cst_19 : f32 to vector<32x256xf32>
    %20 = arith.maximumf %18, %19 : vector<32x256xf32>
    %21 = vector.extract_strided_slice %20 {offsets = [0, 0], sizes = [8, 256], strides = [1, 1]} : vector<32x256xf32> to vector<8x256xf32>
    %22 = vector.extract_strided_slice %20 {offsets = [8, 0], sizes = [8, 256], strides = [1, 1]} : vector<32x256xf32> to vector<8x256xf32>
    %23 = vector.extract_strided_slice %20 {offsets = [16, 0], sizes = [8, 256], strides = [1, 1]} : vector<32x256xf32> to vector<8x256xf32>
    %24 = vector.extract_strided_slice %20 {offsets = [24, 0], sizes = [8, 256], strides = [1, 1]} : vector<32x256xf32> to vector<8x256xf32>
    %25 = vector.extract_strided_slice %11 {offsets = [0, 4], sizes = [8, 1], strides = [1, 1]} : vector<8x9xf32> to vector<8x1xf32>
    %26 = vector.broadcast %25 : vector<8x1xf32> to vector<8x256xf32>
    %27 = arith.mulf %22, %26 : vector<8x256xf32>
    %c17_i32 = arith.constant 17 : i32
    %28 = tpu.dynamic_rotate %22 by %c17_i32 dim 1 : vector<8x256xf32>, i32 -> vector<8x256xf32>
    %29 = vector.extract_strided_slice %3 {offsets = [0, 0], sizes = [1, 256], strides = [1, 1]} : vector<9x256xf32> to vector<1x256xf32>
    %30 = vector.broadcast %29 : vector<1x256xf32> to vector<8x256xf32>
    %31 = arith.mulf %28, %30 : vector<8x256xf32>
    %32 = vector.extract_strided_slice %11 {offsets = [0, 0], sizes = [8, 1], strides = [1, 1]} : vector<8x9xf32> to vector<8x1xf32>
    %33 = vector.broadcast %32 : vector<8x1xf32> to vector<8x256xf32>
    %34 = arith.mulf %31, %33 : vector<8x256xf32>
    %35 = arith.addf %27, %34 : vector<8x256xf32>
    %c16_i32 = arith.constant 16 : i32
    %36 = tpu.dynamic_rotate %22 by %c16_i32 dim 1 : vector<8x256xf32>, i32 -> vector<8x256xf32>
    %37 = vector.extract_strided_slice %3 {offsets = [1, 0], sizes = [1, 256], strides = [1, 1]} : vector<9x256xf32> to vector<1x256xf32>
    %38 = vector.broadcast %37 : vector<1x256xf32> to vector<8x256xf32>
    %39 = arith.mulf %36, %38 : vector<8x256xf32>
    %40 = vector.extract_strided_slice %11 {offsets = [0, 1], sizes = [8, 1], strides = [1, 1]} : vector<8x9xf32> to vector<8x1xf32>
    %41 = vector.broadcast %40 : vector<8x1xf32> to vector<8x256xf32>
    %42 = arith.mulf %39, %41 : vector<8x256xf32>
    %43 = arith.addf %35, %42 : vector<8x256xf32>
    %c15_i32 = arith.constant 15 : i32
    %44 = tpu.dynamic_rotate %22 by %c15_i32 dim 1 : vector<8x256xf32>, i32 -> vector<8x256xf32>
    %45 = vector.extract_strided_slice %3 {offsets = [2, 0], sizes = [1, 256], strides = [1, 1]} : vector<9x256xf32> to vector<1x256xf32>
    %46 = vector.broadcast %45 : vector<1x256xf32> to vector<8x256xf32>
    %47 = arith.mulf %44, %46 : vector<8x256xf32>
    %48 = vector.extract_strided_slice %11 {offsets = [0, 2], sizes = [8, 1], strides = [1, 1]} : vector<8x9xf32> to vector<8x1xf32>
    %49 = vector.broadcast %48 : vector<8x1xf32> to vector<8x256xf32>
    %50 = arith.mulf %47, %49 : vector<8x256xf32>
    %51 = arith.addf %43, %50 : vector<8x256xf32>
    %c1_i32 = arith.constant 1 : i32
    %52 = tpu.dynamic_rotate %22 by %c1_i32 dim 1 : vector<8x256xf32>, i32 -> vector<8x256xf32>
    %53 = vector.extract_strided_slice %3 {offsets = [3, 0], sizes = [1, 256], strides = [1, 1]} : vector<9x256xf32> to vector<1x256xf32>
    %54 = vector.broadcast %53 : vector<1x256xf32> to vector<8x256xf32>
    %55 = arith.mulf %52, %54 : vector<8x256xf32>
    %56 = vector.extract_strided_slice %11 {offsets = [0, 3], sizes = [8, 1], strides = [1, 1]} : vector<8x9xf32> to vector<8x1xf32>
    %57 = vector.broadcast %56 : vector<8x1xf32> to vector<8x256xf32>
    %58 = arith.mulf %55, %57 : vector<8x256xf32>
    %59 = arith.addf %51, %58 : vector<8x256xf32>
    %c255_i32 = arith.constant 255 : i32
    %60 = tpu.dynamic_rotate %22 by %c255_i32 dim 1 : vector<8x256xf32>, i32 -> vector<8x256xf32>
    %61 = vector.extract_strided_slice %3 {offsets = [5, 0], sizes = [1, 256], strides = [1, 1]} : vector<9x256xf32> to vector<1x256xf32>
    %62 = vector.broadcast %61 : vector<1x256xf32> to vector<8x256xf32>
    %63 = arith.mulf %60, %62 : vector<8x256xf32>
    %64 = vector.extract_strided_slice %11 {offsets = [0, 5], sizes = [8, 1], strides = [1, 1]} : vector<8x9xf32> to vector<8x1xf32>
    %65 = vector.broadcast %64 : vector<8x1xf32> to vector<8x256xf32>
    %66 = arith.mulf %63, %65 : vector<8x256xf32>
    %67 = arith.addf %59, %66 : vector<8x256xf32>
    %c241_i32 = arith.constant 241 : i32
    %68 = tpu.dynamic_rotate %22 by %c241_i32 dim 1 : vector<8x256xf32>, i32 -> vector<8x256xf32>
    %69 = vector.extract_strided_slice %3 {offsets = [6, 0], sizes = [1, 256], strides = [1, 1]} : vector<9x256xf32> to vector<1x256xf32>
    %70 = vector.broadcast %69 : vector<1x256xf32> to vector<8x256xf32>
    %71 = arith.mulf %68, %70 : vector<8x256xf32>
    %72 = vector.extract_strided_slice %11 {offsets = [0, 6], sizes = [8, 1], strides = [1, 1]} : vector<8x9xf32> to vector<8x1xf32>
    %73 = vector.broadcast %72 : vector<8x1xf32> to vector<8x256xf32>
    %74 = arith.mulf %71, %73 : vector<8x256xf32>
    %75 = arith.addf %67, %74 : vector<8x256xf32>
    %c240_i32 = arith.constant 240 : i32
    %76 = tpu.dynamic_rotate %22 by %c240_i32 dim 1 : vector<8x256xf32>, i32 -> vector<8x256xf32>
    %77 = vector.extract_strided_slice %3 {offsets = [7, 0], sizes = [1, 256], strides = [1, 1]} : vector<9x256xf32> to vector<1x256xf32>
    %78 = vector.broadcast %77 : vector<1x256xf32> to vector<8x256xf32>
    %79 = arith.mulf %76, %78 : vector<8x256xf32>
    %80 = vector.extract_strided_slice %11 {offsets = [0, 7], sizes = [8, 1], strides = [1, 1]} : vector<8x9xf32> to vector<8x1xf32>
    %81 = vector.broadcast %80 : vector<8x1xf32> to vector<8x256xf32>
    %82 = arith.mulf %79, %81 : vector<8x256xf32>
    %83 = arith.addf %75, %82 : vector<8x256xf32>
    %c239_i32 = arith.constant 239 : i32
    %84 = tpu.dynamic_rotate %22 by %c239_i32 dim 1 : vector<8x256xf32>, i32 -> vector<8x256xf32>
    %85 = vector.extract_strided_slice %3 {offsets = [8, 0], sizes = [1, 256], strides = [1, 1]} : vector<9x256xf32> to vector<1x256xf32>
    %86 = vector.broadcast %85 : vector<1x256xf32> to vector<8x256xf32>
    %87 = arith.mulf %84, %86 : vector<8x256xf32>
    %88 = vector.extract_strided_slice %11 {offsets = [0, 8], sizes = [8, 1], strides = [1, 1]} : vector<8x9xf32> to vector<8x1xf32>
    %89 = vector.broadcast %88 : vector<8x1xf32> to vector<8x256xf32>
    %90 = arith.mulf %87, %89 : vector<8x256xf32>
    %91 = arith.addf %83, %90 : vector<8x256xf32>
    %92 = vector.broadcast %5 : vector<8x1xf32> to vector<8x256xf32>
    %93 = arith.addf %91, %92 : vector<8x256xf32>
    %cst_20 = arith.constant 0.000000e+00 : f32
    %94 = vector.broadcast %cst_20 : f32 to vector<8x256xf32>
    %95 = arith.maximumf %93, %94 : vector<8x256xf32>
    %96 = vector.extract_strided_slice %95 {offsets = [0, 0], sizes = [2, 256], strides = [1, 1]} : vector<8x256xf32> to vector<2x256xf32>
    %97 = vector.extract_strided_slice %23 {offsets = [0, 0], sizes = [2, 256], strides = [1, 1]} : vector<8x256xf32> to vector<2x256xf32>
    %98 = vector.extract_strided_slice %95 {offsets = [2, 0], sizes = [2, 256], strides = [1, 1]} : vector<8x256xf32> to vector<2x256xf32>
    %99 = vector.extract_strided_slice %23 {offsets = [2, 0], sizes = [2, 256], strides = [1, 1]} : vector<8x256xf32> to vector<2x256xf32>
    %100 = vector.extract_strided_slice %95 {offsets = [4, 0], sizes = [2, 256], strides = [1, 1]} : vector<8x256xf32> to vector<2x256xf32>
    %101 = vector.extract_strided_slice %23 {offsets = [4, 0], sizes = [2, 256], strides = [1, 1]} : vector<8x256xf32> to vector<2x256xf32>
    %102 = vector.extract_strided_slice %95 {offsets = [6, 0], sizes = [2, 256], strides = [1, 1]} : vector<8x256xf32> to vector<2x256xf32>
    %103 = vector.extract_strided_slice %23 {offsets = [6, 0], sizes = [2, 256], strides = [1, 1]} : vector<8x256xf32> to vector<2x256xf32>
    %104 = tpu.concatenate %96, %97, %98, %99, %100, %101, %102, %103 in 0 : vector<2x256xf32>, vector<2x256xf32>, vector<2x256xf32>, vector<2x256xf32>, vector<2x256xf32>, vector<2x256xf32>, vector<2x256xf32>, vector<2x256xf32> -> vector<16x256xf32>
    %105 = vector.extract_strided_slice %12 {offsets = [0, 4], sizes = [16, 1], strides = [1, 1]} : vector<16x9xf32> to vector<16x1xf32>
    %106 = vector.broadcast %105 : vector<16x1xf32> to vector<16x256xf32>
    %107 = arith.mulf %104, %106 : vector<16x256xf32>
    %c17_i32_21 = arith.constant 17 : i32
    %108 = tpu.dynamic_rotate %104 by %c17_i32_21 dim 1 : vector<16x256xf32>, i32 -> vector<16x256xf32>
    %109 = vector.extract_strided_slice %3 {offsets = [0, 0], sizes = [1, 256], strides = [1, 1]} : vector<9x256xf32> to vector<1x256xf32>
    %110 = vector.broadcast %109 : vector<1x256xf32> to vector<16x256xf32>
    %111 = arith.mulf %108, %110 : vector<16x256xf32>
    %112 = vector.extract_strided_slice %12 {offsets = [0, 0], sizes = [16, 1], strides = [1, 1]} : vector<16x9xf32> to vector<16x1xf32>
    %113 = vector.broadcast %112 : vector<16x1xf32> to vector<16x256xf32>
    %114 = arith.mulf %111, %113 : vector<16x256xf32>
    %115 = arith.addf %107, %114 : vector<16x256xf32>
    %c16_i32_22 = arith.constant 16 : i32
    %116 = tpu.dynamic_rotate %104 by %c16_i32_22 dim 1 : vector<16x256xf32>, i32 -> vector<16x256xf32>
    %117 = vector.extract_strided_slice %3 {offsets = [1, 0], sizes = [1, 256], strides = [1, 1]} : vector<9x256xf32> to vector<1x256xf32>
    %118 = vector.broadcast %117 : vector<1x256xf32> to vector<16x256xf32>
    %119 = arith.mulf %116, %118 : vector<16x256xf32>
    %120 = vector.extract_strided_slice %12 {offsets = [0, 1], sizes = [16, 1], strides = [1, 1]} : vector<16x9xf32> to vector<16x1xf32>
    %121 = vector.broadcast %120 : vector<16x1xf32> to vector<16x256xf32>
    %122 = arith.mulf %119, %121 : vector<16x256xf32>
    %123 = arith.addf %115, %122 : vector<16x256xf32>
    %c15_i32_23 = arith.constant 15 : i32
    %124 = tpu.dynamic_rotate %104 by %c15_i32_23 dim 1 : vector<16x256xf32>, i32 -> vector<16x256xf32>
    %125 = vector.extract_strided_slice %3 {offsets = [2, 0], sizes = [1, 256], strides = [1, 1]} : vector<9x256xf32> to vector<1x256xf32>
    %126 = vector.broadcast %125 : vector<1x256xf32> to vector<16x256xf32>
    %127 = arith.mulf %124, %126 : vector<16x256xf32>
    %128 = vector.extract_strided_slice %12 {offsets = [0, 2], sizes = [16, 1], strides = [1, 1]} : vector<16x9xf32> to vector<16x1xf32>
    %129 = vector.broadcast %128 : vector<16x1xf32> to vector<16x256xf32>
    %130 = arith.mulf %127, %129 : vector<16x256xf32>
    %131 = arith.addf %123, %130 : vector<16x256xf32>
    %c1_i32_24 = arith.constant 1 : i32
    %132 = tpu.dynamic_rotate %104 by %c1_i32_24 dim 1 : vector<16x256xf32>, i32 -> vector<16x256xf32>
    %133 = vector.extract_strided_slice %3 {offsets = [3, 0], sizes = [1, 256], strides = [1, 1]} : vector<9x256xf32> to vector<1x256xf32>
    %134 = vector.broadcast %133 : vector<1x256xf32> to vector<16x256xf32>
    %135 = arith.mulf %132, %134 : vector<16x256xf32>
    %136 = vector.extract_strided_slice %12 {offsets = [0, 3], sizes = [16, 1], strides = [1, 1]} : vector<16x9xf32> to vector<16x1xf32>
    %137 = vector.broadcast %136 : vector<16x1xf32> to vector<16x256xf32>
    %138 = arith.mulf %135, %137 : vector<16x256xf32>
    %139 = arith.addf %131, %138 : vector<16x256xf32>
    %c255_i32_25 = arith.constant 255 : i32
    %140 = tpu.dynamic_rotate %104 by %c255_i32_25 dim 1 : vector<16x256xf32>, i32 -> vector<16x256xf32>
    %141 = vector.extract_strided_slice %3 {offsets = [5, 0], sizes = [1, 256], strides = [1, 1]} : vector<9x256xf32> to vector<1x256xf32>
    %142 = vector.broadcast %141 : vector<1x256xf32> to vector<16x256xf32>
    %143 = arith.mulf %140, %142 : vector<16x256xf32>
    %144 = vector.extract_strided_slice %12 {offsets = [0, 5], sizes = [16, 1], strides = [1, 1]} : vector<16x9xf32> to vector<16x1xf32>
    %145 = vector.broadcast %144 : vector<16x1xf32> to vector<16x256xf32>
    %146 = arith.mulf %143, %145 : vector<16x256xf32>
    %147 = arith.addf %139, %146 : vector<16x256xf32>
    %c241_i32_26 = arith.constant 241 : i32
    %148 = tpu.dynamic_rotate %104 by %c241_i32_26 dim 1 : vector<16x256xf32>, i32 -> vector<16x256xf32>
    %149 = vector.extract_strided_slice %3 {offsets = [6, 0], sizes = [1, 256], strides = [1, 1]} : vector<9x256xf32> to vector<1x256xf32>
    %150 = vector.broadcast %149 : vector<1x256xf32> to vector<16x256xf32>
    %151 = arith.mulf %148, %150 : vector<16x256xf32>
    %152 = vector.extract_strided_slice %12 {offsets = [0, 6], sizes = [16, 1], strides = [1, 1]} : vector<16x9xf32> to vector<16x1xf32>
    %153 = vector.broadcast %152 : vector<16x1xf32> to vector<16x256xf32>
    %154 = arith.mulf %151, %153 : vector<16x256xf32>
    %155 = arith.addf %147, %154 : vector<16x256xf32>
    %c240_i32_27 = arith.constant 240 : i32
    %156 = tpu.dynamic_rotate %104 by %c240_i32_27 dim 1 : vector<16x256xf32>, i32 -> vector<16x256xf32>
    %157 = vector.extract_strided_slice %3 {offsets = [7, 0], sizes = [1, 256], strides = [1, 1]} : vector<9x256xf32> to vector<1x256xf32>
    %158 = vector.broadcast %157 : vector<1x256xf32> to vector<16x256xf32>
    %159 = arith.mulf %156, %158 : vector<16x256xf32>
    %160 = vector.extract_strided_slice %12 {offsets = [0, 7], sizes = [16, 1], strides = [1, 1]} : vector<16x9xf32> to vector<16x1xf32>
    %161 = vector.broadcast %160 : vector<16x1xf32> to vector<16x256xf32>
    %162 = arith.mulf %159, %161 : vector<16x256xf32>
    %163 = arith.addf %155, %162 : vector<16x256xf32>
    %c239_i32_28 = arith.constant 239 : i32
    %164 = tpu.dynamic_rotate %104 by %c239_i32_28 dim 1 : vector<16x256xf32>, i32 -> vector<16x256xf32>
    %165 = vector.extract_strided_slice %3 {offsets = [8, 0], sizes = [1, 256], strides = [1, 1]} : vector<9x256xf32> to vector<1x256xf32>
    %166 = vector.broadcast %165 : vector<1x256xf32> to vector<16x256xf32>
    %167 = arith.mulf %164, %166 : vector<16x256xf32>
    %168 = vector.extract_strided_slice %12 {offsets = [0, 8], sizes = [16, 1], strides = [1, 1]} : vector<16x9xf32> to vector<16x1xf32>
    %169 = vector.broadcast %168 : vector<16x1xf32> to vector<16x256xf32>
    %170 = arith.mulf %167, %169 : vector<16x256xf32>
    %171 = arith.addf %163, %170 : vector<16x256xf32>
    %172 = vector.extract_strided_slice %171 {offsets = [0, 0], sizes = [8, 256], strides = [1, 1]} : vector<16x256xf32> to vector<8x256xf32>
    %173 = vector.extract_strided_slice %171 {offsets = [8, 0], sizes = [8, 256], strides = [1, 1]} : vector<16x256xf32> to vector<8x256xf32>
    %174 = arith.addf %172, %173 : vector<8x256xf32>
    %175 = vector.broadcast %6 : vector<8x1xf32> to vector<8x256xf32>
    %176 = arith.addf %174, %175 : vector<8x256xf32>
    %cst_29 = arith.constant 0.000000e+00 : f32
    %177 = vector.broadcast %cst_29 : f32 to vector<8x256xf32>
    %178 = arith.maximumf %176, %177 : vector<8x256xf32>
    %179 = vector.extract_strided_slice %178 {offsets = [0, 0], sizes = [4, 256], strides = [1, 1]} : vector<8x256xf32> to vector<4x256xf32>
    %180 = vector.extract_strided_slice %24 {offsets = [0, 0], sizes = [4, 256], strides = [1, 1]} : vector<8x256xf32> to vector<4x256xf32>
    %181 = vector.extract_strided_slice %178 {offsets = [4, 0], sizes = [4, 256], strides = [1, 1]} : vector<8x256xf32> to vector<4x256xf32>
    %182 = vector.extract_strided_slice %24 {offsets = [4, 0], sizes = [4, 256], strides = [1, 1]} : vector<8x256xf32> to vector<4x256xf32>
    %183 = tpu.concatenate %179, %180, %181, %182 in 0 : vector<4x256xf32>, vector<4x256xf32>, vector<4x256xf32>, vector<4x256xf32> -> vector<16x256xf32>
    %184 = vector.extract_strided_slice %13 {offsets = [0, 4], sizes = [16, 1], strides = [1, 1]} : vector<16x9xf32> to vector<16x1xf32>
    %185 = vector.broadcast %184 : vector<16x1xf32> to vector<16x256xf32>
    %186 = arith.mulf %183, %185 : vector<16x256xf32>
    %c17_i32_30 = arith.constant 17 : i32
    %187 = tpu.dynamic_rotate %183 by %c17_i32_30 dim 1 : vector<16x256xf32>, i32 -> vector<16x256xf32>
    %188 = vector.extract_strided_slice %3 {offsets = [0, 0], sizes = [1, 256], strides = [1, 1]} : vector<9x256xf32> to vector<1x256xf32>
    %189 = vector.broadcast %188 : vector<1x256xf32> to vector<16x256xf32>
    %190 = arith.mulf %187, %189 : vector<16x256xf32>
    %191 = vector.extract_strided_slice %13 {offsets = [0, 0], sizes = [16, 1], strides = [1, 1]} : vector<16x9xf32> to vector<16x1xf32>
    %192 = vector.broadcast %191 : vector<16x1xf32> to vector<16x256xf32>
    %193 = arith.mulf %190, %192 : vector<16x256xf32>
    %194 = arith.addf %186, %193 : vector<16x256xf32>
    %c16_i32_31 = arith.constant 16 : i32
    %195 = tpu.dynamic_rotate %183 by %c16_i32_31 dim 1 : vector<16x256xf32>, i32 -> vector<16x256xf32>
    %196 = vector.extract_strided_slice %3 {offsets = [1, 0], sizes = [1, 256], strides = [1, 1]} : vector<9x256xf32> to vector<1x256xf32>
    %197 = vector.broadcast %196 : vector<1x256xf32> to vector<16x256xf32>
    %198 = arith.mulf %195, %197 : vector<16x256xf32>
    %199 = vector.extract_strided_slice %13 {offsets = [0, 1], sizes = [16, 1], strides = [1, 1]} : vector<16x9xf32> to vector<16x1xf32>
    %200 = vector.broadcast %199 : vector<16x1xf32> to vector<16x256xf32>
    %201 = arith.mulf %198, %200 : vector<16x256xf32>
    %202 = arith.addf %194, %201 : vector<16x256xf32>
    %c15_i32_32 = arith.constant 15 : i32
    %203 = tpu.dynamic_rotate %183 by %c15_i32_32 dim 1 : vector<16x256xf32>, i32 -> vector<16x256xf32>
    %204 = vector.extract_strided_slice %3 {offsets = [2, 0], sizes = [1, 256], strides = [1, 1]} : vector<9x256xf32> to vector<1x256xf32>
    %205 = vector.broadcast %204 : vector<1x256xf32> to vector<16x256xf32>
    %206 = arith.mulf %203, %205 : vector<16x256xf32>
    %207 = vector.extract_strided_slice %13 {offsets = [0, 2], sizes = [16, 1], strides = [1, 1]} : vector<16x9xf32> to vector<16x1xf32>
    %208 = vector.broadcast %207 : vector<16x1xf32> to vector<16x256xf32>
    %209 = arith.mulf %206, %208 : vector<16x256xf32>
    %210 = arith.addf %202, %209 : vector<16x256xf32>
    %c1_i32_33 = arith.constant 1 : i32
    %211 = tpu.dynamic_rotate %183 by %c1_i32_33 dim 1 : vector<16x256xf32>, i32 -> vector<16x256xf32>
    %212 = vector.extract_strided_slice %3 {offsets = [3, 0], sizes = [1, 256], strides = [1, 1]} : vector<9x256xf32> to vector<1x256xf32>
    %213 = vector.broadcast %212 : vector<1x256xf32> to vector<16x256xf32>
    %214 = arith.mulf %211, %213 : vector<16x256xf32>
    %215 = vector.extract_strided_slice %13 {offsets = [0, 3], sizes = [16, 1], strides = [1, 1]} : vector<16x9xf32> to vector<16x1xf32>
    %216 = vector.broadcast %215 : vector<16x1xf32> to vector<16x256xf32>
    %217 = arith.mulf %214, %216 : vector<16x256xf32>
    %218 = arith.addf %210, %217 : vector<16x256xf32>
    %c255_i32_34 = arith.constant 255 : i32
    %219 = tpu.dynamic_rotate %183 by %c255_i32_34 dim 1 : vector<16x256xf32>, i32 -> vector<16x256xf32>
    %220 = vector.extract_strided_slice %3 {offsets = [5, 0], sizes = [1, 256], strides = [1, 1]} : vector<9x256xf32> to vector<1x256xf32>
    %221 = vector.broadcast %220 : vector<1x256xf32> to vector<16x256xf32>
    %222 = arith.mulf %219, %221 : vector<16x256xf32>
    %223 = vector.extract_strided_slice %13 {offsets = [0, 5], sizes = [16, 1], strides = [1, 1]} : vector<16x9xf32> to vector<16x1xf32>
    %224 = vector.broadcast %223 : vector<16x1xf32> to vector<16x256xf32>
    %225 = arith.mulf %222, %224 : vector<16x256xf32>
    %226 = arith.addf %218, %225 : vector<16x256xf32>
    %c241_i32_35 = arith.constant 241 : i32
    %227 = tpu.dynamic_rotate %183 by %c241_i32_35 dim 1 : vector<16x256xf32>, i32 -> vector<16x256xf32>
    %228 = vector.extract_strided_slice %3 {offsets = [6, 0], sizes = [1, 256], strides = [1, 1]} : vector<9x256xf32> to vector<1x256xf32>
    %229 = vector.broadcast %228 : vector<1x256xf32> to vector<16x256xf32>
    %230 = arith.mulf %227, %229 : vector<16x256xf32>
    %231 = vector.extract_strided_slice %13 {offsets = [0, 6], sizes = [16, 1], strides = [1, 1]} : vector<16x9xf32> to vector<16x1xf32>
    %232 = vector.broadcast %231 : vector<16x1xf32> to vector<16x256xf32>
    %233 = arith.mulf %230, %232 : vector<16x256xf32>
    %234 = arith.addf %226, %233 : vector<16x256xf32>
    %c240_i32_36 = arith.constant 240 : i32
    %235 = tpu.dynamic_rotate %183 by %c240_i32_36 dim 1 : vector<16x256xf32>, i32 -> vector<16x256xf32>
    %236 = vector.extract_strided_slice %3 {offsets = [7, 0], sizes = [1, 256], strides = [1, 1]} : vector<9x256xf32> to vector<1x256xf32>
    %237 = vector.broadcast %236 : vector<1x256xf32> to vector<16x256xf32>
    %238 = arith.mulf %235, %237 : vector<16x256xf32>
    %239 = vector.extract_strided_slice %13 {offsets = [0, 7], sizes = [16, 1], strides = [1, 1]} : vector<16x9xf32> to vector<16x1xf32>
    %240 = vector.broadcast %239 : vector<16x1xf32> to vector<16x256xf32>
    %241 = arith.mulf %238, %240 : vector<16x256xf32>
    %242 = arith.addf %234, %241 : vector<16x256xf32>
    %c239_i32_37 = arith.constant 239 : i32
    %243 = tpu.dynamic_rotate %183 by %c239_i32_37 dim 1 : vector<16x256xf32>, i32 -> vector<16x256xf32>
    %244 = vector.extract_strided_slice %3 {offsets = [8, 0], sizes = [1, 256], strides = [1, 1]} : vector<9x256xf32> to vector<1x256xf32>
    %245 = vector.broadcast %244 : vector<1x256xf32> to vector<16x256xf32>
    %246 = arith.mulf %243, %245 : vector<16x256xf32>
    %247 = vector.extract_strided_slice %13 {offsets = [0, 8], sizes = [16, 1], strides = [1, 1]} : vector<16x9xf32> to vector<16x1xf32>
    %248 = vector.broadcast %247 : vector<16x1xf32> to vector<16x256xf32>
    %249 = arith.mulf %246, %248 : vector<16x256xf32>
    %250 = arith.addf %242, %249 : vector<16x256xf32>
    %251 = vector.extract_strided_slice %250 {offsets = [0, 0], sizes = [8, 256], strides = [1, 1]} : vector<16x256xf32> to vector<8x256xf32>
    %252 = vector.extract_strided_slice %250 {offsets = [8, 0], sizes = [8, 256], strides = [1, 1]} : vector<16x256xf32> to vector<8x256xf32>
    %253 = arith.addf %251, %252 : vector<8x256xf32>
    %254 = vector.broadcast %7 : vector<8x1xf32> to vector<8x256xf32>
    %255 = arith.addf %253, %254 : vector<8x256xf32>
    %cst_38 = arith.constant 0.000000e+00 : f32
    %256 = vector.broadcast %cst_38 : f32 to vector<8x256xf32>
    %257 = arith.maximumf %255, %256 : vector<8x256xf32>
    %258 = tpu.concatenate %21, %95, %178, %257 in 0 : vector<8x256xf32>, vector<8x256xf32>, vector<8x256xf32>, vector<8x256xf32> -> vector<32x256xf32>
    %cst_39 = arith.constant dense<0.000000e+00> : vector<16x256xf32>
    %259 = tpu.matmul %1, %258, %cst_39 {dimension_numbers = #tpu.dot_dimension_numbers<[1], [0], [0], [1], [0, 0, 1, 1], [], []>} : vector<16x32xf32>, vector<32x256xf32>, vector<16x256xf32> -> vector<16x256xf32>
    %260 = vector.broadcast %8 : vector<16x1xf32> to vector<16x256xf32>
    %261 = arith.addf %259, %260 : vector<16x256xf32>
    %cst_40 = arith.constant 0.000000e+00 : f32
    %262 = vector.broadcast %cst_40 : f32 to vector<16x256xf32>
    %263 = arith.maximumf %261, %262 : vector<16x256xf32>
    %cst_41 = arith.constant dense<0xFF800000> : vector<16xf32>
    %264 = vector.multi_reduction <maximumf>, %15, %cst_41 [1] : vector<16x256xf32> to vector<16xf32>
    %265 = vector.shape_cast %264 : vector<16xf32> to vector<16x1xf32>
    %266 = arith.mulf %9, %265 : vector<16x1xf32>
    %cst_42 = arith.constant dense<0.000000e+00> : vector<1xf32>
    %267 = vector.multi_reduction <add>, %266, %cst_42 [0] : vector<16x1xf32> to vector<1xf32>
    %268 = vector.shape_cast %267 : vector<1xf32> to vector<1x1xf32>
    %cst_43 = arith.constant 0.000000e+00 : f32
    %269 = vector.broadcast %cst_43 : f32 to vector<1x1xf32>
    %270 = arith.maximumf %268, %269 : vector<1x1xf32>
    %271 = vector.broadcast %270 : vector<1x1xf32> to vector<16x1xf32>
    %272 = arith.mulf %10, %271 : vector<16x1xf32>
    %cst_44 = arith.constant dense<0.000000e+00> : vector<16xf32>
    %273 = vector.multi_reduction <add>, %272, %cst_44 [1] : vector<16x1xf32> to vector<16xf32>
    %274 = vector.shape_cast %273 : vector<16xf32> to vector<16x1xf32>
    %cst_45 = arith.constant 0.000000e+00 : f32
    %275 = vector.broadcast %cst_45 : f32 to vector<16x1xf32>
    %276 = arith.subf %275, %274 : vector<16x1xf32>
    %277 = math.exp %276 : vector<16x1xf32>
    %cst_46 = arith.constant 1.000000e+00 : f32
    %278 = vector.broadcast %cst_46 : f32 to vector<16x1xf32>
    %279 = arith.addf %278, %277 : vector<16x1xf32>
    %280 = tpu.reciprocal %279 {approx = true} : vector<16x1xf32> -> vector<16x1xf32>
    %281 = vector.broadcast %280 : vector<16x1xf32> to vector<16x256xf32>
    %282 = arith.mulf %263, %281 : vector<16x256xf32>
    %c0_47 = arith.constant 0 : index
    %c0_48 = arith.constant 0 : index
    %c0_49 = arith.constant 0 : index
    %283 = vector.load %arg8[%c0_47, %c0_48, %c0_49] : memref<1x16x256xf32, #tpu.memory_space<vmem>>, vector<1x16x256xf32>
    %284 = vector.shape_cast %283 : vector<1x16x256xf32> to vector<16x256xf32>
    %285 = vector.shape_cast %282 : vector<16x256xf32> to vector<1x16x256xf32>
    tpu.vector_store %arg8[%c0_47, %c0_48, %c0_49], %285 {strides = array<i32>} : memref<1x16x256xf32, #tpu.memory_space<vmem>>, vector<1x16x256xf32>,
    return
  }
  func.func @transform_0(%arg0: i32) -> (i32, i32, i32) {
    %c0_i32 = arith.constant 0 : i32
    %c0_i32_0 = arith.constant 0 : i32
    %c0_i32_1 = arith.constant 0 : i32
    return %arg0, %c0_i32, %c0_i32_0 : i32, i32, i32
  }
  func.func @transform_1(%arg0: i32) -> (i32, i32) {
    %c0_i32 = arith.constant 0 : i32
    %c0_i32_0 = arith.constant 0 : i32
    %c0_i32_1 = arith.constant 0 : i32
    return %c0_i32, %c0_i32_0 : i32, i32
  }
  func.func @transform_2(%arg0: i32) -> (i32, i32) {
    %c0_i32 = arith.constant 0 : i32
    %c0_i32_0 = arith.constant 0 : i32
    %c0_i32_1 = arith.constant 0 : i32
    return %c0_i32, %c0_i32_0 : i32, i32
  }
  func.func @transform_3(%arg0: i32) -> (i32, i32) {
    %c0_i32 = arith.constant 0 : i32
    %c0_i32_0 = arith.constant 0 : i32
    %c0_i32_1 = arith.constant 0 : i32
    return %c0_i32, %c0_i32_0 : i32, i32
  }
  func.func @transform_4(%arg0: i32) -> (i32, i32) {
    %c0_i32 = arith.constant 0 : i32
    %c0_i32_0 = arith.constant 0 : i32
    %c0_i32_1 = arith.constant 0 : i32
    return %c0_i32, %c0_i32_0 : i32, i32
  }
  func.func @transform_5(%arg0: i32) -> (i32, i32) {
    %c0_i32 = arith.constant 0 : i32
    %c0_i32_0 = arith.constant 0 : i32
    %c0_i32_1 = arith.constant 0 : i32
    return %c0_i32, %c0_i32_0 : i32, i32
  }
  func.func @transform_6(%arg0: i32) -> (i32, i32) {
    %c0_i32 = arith.constant 0 : i32
    %c0_i32_0 = arith.constant 0 : i32
    %c0_i32_1 = arith.constant 0 : i32
    return %c0_i32, %c0_i32_0 : i32, i32
  }
  func.func @transform_7(%arg0: i32) -> (i32, i32, i32) {
    %c0_i32 = arith.constant 0 : i32
    %c0_i32_0 = arith.constant 0 : i32
    %c0_i32_1 = arith.constant 0 : i32
    return %arg0, %c0_i32, %c0_i32_0 : i32, i32, i32
  }
}

</mosaic_0001>

<llo_original>
// kernel: tpu_custom_call.1
$region0: #{tpu_custom_call.1}
  #allocation0 [shape = 'u32[]', space=smem, size = 0x4, offset = 0x4, fixed_abs, tag = 'smem constant byte address 0x4 - core index']
  #allocation1 [shape = 'u32[144,128]{1,0:T(1,128)}', space=vmem, size = 0x12000, scoped, tag = 'internal scratch']
  %s0 = inlined_call_operand.vmem [shape: f32[2,16,256], index: 0, kind: input, shape index: {}]
  %s1 = inlined_call_operand.vmem [shape: f32[32,16], index: 1, kind: input, shape index: {}]
  %s2 = inlined_call_operand.vmem [shape: f32[40,9], index: 2, kind: input, shape index: {}]
  %s3 = inlined_call_operand.vmem [shape: f32[72,1], index: 3, kind: input, shape index: {}]
  %s4 = inlined_call_operand.vmem [shape: f32[16,32], index: 4, kind: input, shape index: {}]
  %s5 = inlined_call_operand.vmem [shape: f32[32,1], index: 5, kind: input, shape index: {}]
  %s6 = inlined_call_operand.vmem [shape: f32[9,256], index: 6, kind: input, shape index: {}]
  %s7 = inlined_call_operand.hbm [shape: f32[2,16,256], index: 7, kind: output, shape index: {}]
  %s8 = sld [smem:[#allocation0]]
  $region61: #{tpu_custom_call.1} parent=0
    _
  %s10 = ssub.s32 1, %s8
  %s11 = scalar_select 0, %s10, %s8
  $region1: #{tpu_custom_call.1} parent=0
    #allocation2 [shape = 'u8[32768]{0}', space=vmem, size = 0x8000, scoped, tag = 'output window, operand 0']
    #allocation3 [shape = 's32[2]{0}', space=sflag, size = 0x8, scoped, tag = 'scoped memory for tpu_custom_call.1']
    %12 = vsyncpa [#allocation3], 0
    %s13 = scalar_lea.sflag [#allocation3], 1
    %14 = vsyncpa %s13, 0
    loop: start=0, step=1, limit=4
    $region2: #{tpu_custom_call.1} parent=1 // loop_pre_header
      _
    $region3: #{tpu_custom_call.1} parent=1 // loop_header
      %s16 = sphi 0, %s20
      %p17 = scmp.ge.s32.totalorder %s16, 4
      %s26 = sphi 0, %s28
      %s29 = sphi 0, %s26
      %s30 = sphi 0, %s29
      %s46 = sphi 0, %s30
      %s50 = sphi 0, %s50
      %s52 = sphi 0, %s50
      %s53 = sphi 0, %s52
      %s67 = sphi 0, %s53
      %s71 = sphi 0, %s71
      %s73 = sphi 0, %s71
      %s74 = sphi 0, %s73
      %s88 = sphi 0, %s74
      %s92 = sphi 0, %s92
      %s94 = sphi 0, %s92
      %s95 = sphi 0, %s94
      %s109 = sphi 0, %s95
      %s113 = sphi 0, %s113
      %s115 = sphi 0, %s113
      %s116 = sphi 0, %s115
      %s130 = sphi 0, %s116
      %s134 = sphi 0, %s134
      %s136 = sphi 0, %s134
      %s137 = sphi 0, %s136
      %s151 = sphi 0, %s137
      %s155 = sphi 0, %s155
      %s157 = sphi 0, %s155
      %s158 = sphi 0, %s157
      %s172 = sphi 0, %s158
      %s178 = sphi 0, %s180
      %s181 = sphi 0, %s178
      %s182 = sphi 0, %s181
      %s198 = sphi 0, %s182
    $region4: #{tpu_custom_call.1} parent=1 // loop_header_branch
      %19 = sbr.rel (%p17) target = $region8
    $region5: #{tpu_custom_call.1} parent=1 // loop_body
      %s21 = ssub.s32 %s16, 1
      %s22 = ssub.s32 %s16, 2
      %s23 = sadd.s32 %s16, 1
      %s24 = ssub.s32 %s16, %s23
      %p25 = scmp.eq.s32.totalorder %s24, 0
      %s27 = sadd.s32 %s26, 1
      %s28 = scalar_select %p25, %s26, %s27
      %p31 = pneg %p25
      %p32 = scmp.eq.s32.totalorder %s16, 1
      %p33 = por %p31, %p32
      %p34 = scmp.ne.s32.totalorder %s26, %s29
      %p35 = scmp.eq.s32.totalorder %s16, 0
      %p36 = por %p34, %p35
      %p37 = scmp.ne.s32.totalorder %s26, %s29
      %p38 = scmp.eq.s32.totalorder %s21, 1
      %p39 = por %p37, %p38
      %p40 = scmp.ne.s32.totalorder %s29, %s30
      %p41 = scmp.eq.s32.totalorder %s21, 0
      %p42 = por %p40, %p41
      %p43 = scmp.ne.s32.totalorder %s29, %s30
      %p44 = scmp.eq.s32.totalorder %s22, 1
      %p45 = por %p43, %p44
      %p47 = scmp.ne.s32.totalorder %s30, %s46
      %p48 = scmp.eq.s32.totalorder %s22, 0
      %p49 = por %p47, %p48
      %s51 = sadd.s32 %s50, 1
      %p54 = scmp.eq.s32.totalorder %s16, 1
      %p55 = scmp.ne.s32.totalorder %s50, %s52
      %p56 = scmp.eq.s32.totalorder %s16, 0
      %p57 = por %p55, %p56
      %p58 = scmp.ne.s32.totalorder %s50, %s52
      %p59 = scmp.eq.s32.totalorder %s21, 1
      %p60 = por %p58, %p59
      %p61 = scmp.ne.s32.totalorder %s52, %s53
      %p62 = scmp.eq.s32.totalorder %s21, 0
      %p63 = por %p61, %p62
      %p64 = scmp.ne.s32.totalorder %s52, %s53
      %p65 = scmp.eq.s32.totalorder %s22, 1
      %p66 = por %p64, %p65
      %p68 = scmp.ne.s32.totalorder %s53, %s67
      %p69 = scmp.eq.s32.totalorder %s22, 0
      %p70 = por %p68, %p69
      %s72 = sadd.s32 %s71, 1
      %p75 = scmp.eq.s32.totalorder %s16, 1
      %p76 = scmp.ne.s32.totalorder %s71, %s73
      %p77 = scmp.eq.s32.totalorder %s16, 0
      %p78 = por %p76, %p77
      %p79 = scmp.ne.s32.totalorder %s71, %s73
      %p80 = scmp.eq.s32.totalorder %s21, 1
      %p81 = por %p79, %p80
      %p82 = scmp.ne.s32.totalorder %s73, %s74
      %p83 = scmp.eq.s32.totalorder %s21, 0
      %p84 = por %p82, %p83
      %p85 = scmp.ne.s32.totalorder %s73, %s74
      %p86 = scmp.eq.s32.totalorder %s22, 1
      %p87 = por %p85, %p86
      %p89 = scmp.ne.s32.totalorder %s74, %s88
      %p90 = scmp.eq.s32.totalorder %s22, 0
      %p91 = por %p89, %p90
      %s93 = sadd.s32 %s92, 1
      %p96 = scmp.eq.s32.totalorder %s16, 1
      %p97 = scmp.ne.s32.totalorder %s92, %s94
      %p98 = scmp.eq.s32.totalorder %s16, 0
      %p99 = por %p97, %p98
      %p100 = scmp.ne.s32.totalorder %s92, %s94
      %p101 = scmp.eq.s32.totalorder %s21, 1
      %p102 = por %p100, %p101
      %p103 = scmp.ne.s32.totalorder %s94, %s95
      %p104 = scmp.eq.s32.totalorder %s21, 0
      %p105 = por %p103, %p104
      %p106 = scmp.ne.s32.totalorder %s94, %s95
      %p107 = scmp.eq.s32.totalorder %s22, 1
      %p108 = por %p106, %p107
      %p110 = scmp.ne.s32.totalorder %s95, %s109
      %p111 = scmp.eq.s32.totalorder %s22, 0
      %p112 = por %p110, %p111
      %s114 = sadd.s32 %s113, 1
      %p117 = scmp.eq.s32.totalorder %s16, 1
      %p118 = scmp.ne.s32.totalorder %s113, %s115
      %p119 = scmp.eq.s32.totalorder %s16, 0
      %p120 = por %p118, %p119
      %p121 = scmp.ne.s32.totalorder %s113, %s115
      %p122 = scmp.eq.s32.totalorder %s21, 1
      %p123 = por %p121, %p122
      %p124 = scmp.ne.s32.totalorder %s115, %s116
      %p125 = scmp.eq.s32.totalorder %s21, 0
      %p126 = por %p124, %p125
      %p127 = scmp.ne.s32.totalorder %s115, %s116
      %p128 = scmp.eq.s32.totalorder %s22, 1
      %p129 = por %p127, %p128
      %p131 = scmp.ne.s32.totalorder %s116, %s130
      %p132 = scmp.eq.s32.totalorder %s22, 0
      %p133 = por %p131, %p132
      %s135 = sadd.s32 %s134, 1
      %p138 = scmp.eq.s32.totalorder %s16, 1
      %p139 = scmp.ne.s32.totalorder %s134, %s136
      %p140 = scmp.eq.s32.totalorder %s16, 0
      %p141 = por %p139, %p140
      %p142 = scmp.ne.s32.totalorder %s134, %s136
      %p143 = scmp.eq.s32.totalorder %s21, 1
      %p144 = por %p142, %p143
      %p145 = scmp.ne.s32.totalorder %s136, %s137
      %p146 = scmp.eq.s32.totalorder %s21, 0
      %p147 = por %p145, %p146
      %p148 = scmp.ne.s32.totalorder %s136, %s137
      %p149 = scmp.eq.s32.totalorder %s22, 1
      %p150 = por %p148, %p149
      %p152 = scmp.ne.s32.totalorder %s137, %s151
      %p153 = scmp.eq.s32.totalorder %s22, 0
      %p154 = por %p152, %p153
      %s156 = sadd.s32 %s155, 1
      %p159 = scmp.eq.s32.totalorder %s16, 1
      %p160 = scmp.ne.s32.totalorder %s155, %s157
      %p161 = scmp.eq.s32.totalorder %s16, 0
      %p162 = por %p160, %p161
      %p163 = scmp.ne.s32.totalorder %s155, %s157
      %p164 = scmp.eq.s32.totalorder %s21, 1
      %p165 = por %p163, %p164
      %p166 = scmp.ne.s32.totalorder %s157, %s158
      %p167 = scmp.eq.s32.totalorder %s21, 0
      %p168 = por %p166, %p167
      %p169 = scmp.ne.s32.totalorder %s157, %s158
      %p170 = scmp.eq.s32.totalorder %s22, 1
      %p171 = por %p169, %p170
      %p173 = scmp.ne.s32.totalorder %s158, %s172
      %p174 = scmp.eq.s32.totalorder %s22, 0
      %p175 = por %p173, %p174
      %s176 = ssub.s32 %s16, %s23
      %p177 = scmp.eq.s32.totalorder %s176, 0
      %s179 = sadd.s32 %s178, 1
      %s180 = scalar_select %p177, %s178, %s179
      %p183 = pneg %p177
      %p184 = scmp.eq.s32.totalorder %s16, 1
      %p185 = por %p183, %p184
      %p186 = scmp.ne.s32.totalorder %s178, %s181
      %p187 = scmp.eq.s32.totalorder %s16, 0
      %p188 = por %p186, %p187
      %p189 = scmp.ne.s32.totalorder %s178, %s181
      %p190 = scmp.eq.s32.totalorder %s21, 1
      %p191 = por %p189, %p190
      %p192 = scmp.ne.s32.totalorder %s181, %s182
      %p193 = scmp.eq.s32.totalorder %s21, 0
      %p194 = por %p192, %p193
      %p195 = scmp.ne.s32.totalorder %s181, %s182
      %p196 = scmp.eq.s32.totalorder %s22, 1
      %p197 = por %p195, %p196
      %p199 = scmp.ne.s32.totalorder %s182, %s198
      %p200 = scmp.eq.s32.totalorder %s22, 0
      %p201 = por %p199, %p200
      %p202 = scmp.le.s32.totalorder 1, %s16
      %p203 = scmp.lt.s32.totalorder %s16, 3
      %p204 = pnand %p202, %p203
      %p205 = pneg %p204
      // Predicated region
      $region9: #{tpu_custom_call.1} parent=5 // pred_check
        _
      $region10: #{tpu_custom_call.1} parent=5 // pred_check_branch
        %207 = sbr.rel (%p204) target = $region12
      $region11: #{tpu_custom_call.1} parent=5 // pred_region
        %s208 = ssub.s32 %s16, 1
        // Predicated region
        $region13: #{tpu_custom_call.1} parent=11 // pred_check
          %p209 = pneg %p63
        $region14: #{tpu_custom_call.1} parent=11 // pred_check_branch
          %211 = sbr.rel (%p209) target = $region16
        $region15: #{tpu_custom_call.1} parent=11 // pred_region
          _
        $region16: #{tpu_custom_call.1} parent=11 // pred_fallthru
          _
        // Predicated region
        $region17: #{tpu_custom_call.1} parent=11 // pred_check
          %p212 = pneg %p84
        $region18: #{tpu_custom_call.1} parent=11 // pred_check_branch
          %214 = sbr.rel (%p212) target = $region20
        $region19: #{tpu_custom_call.1} parent=11 // pred_region
          _
        $region20: #{tpu_custom_call.1} parent=11 // pred_fallthru
          _
        // Predicated region
        $region21: #{tpu_custom_call.1} parent=11 // pred_check
          %p215 = pneg %p105
        $region22: #{tpu_custom_call.1} parent=11 // pred_check_branch
          %217 = sbr.rel (%p215) target = $region24
        $region23: #{tpu_custom_call.1} parent=11 // pred_region
          _
        $region24: #{tpu_custom_call.1} parent=11 // pred_fallthru
          _
        // Predicated region
        $region25: #{tpu_custom_call.1} parent=11 // pred_check
          %p218 = pneg %p126
        $region26: #{tpu_custom_call.1} parent=11 // pred_check_branch
          %220 = sbr.rel (%p218) target = $region28
        $region27: #{tpu_custom_call.1} parent=11 // pred_region
          _
        $region28: #{tpu_custom_call.1} parent=11 // pred_fallthru
          _
        // Predicated region
        $region29: #{tpu_custom_call.1} parent=11 // pred_check
          %p221 = pneg %p147
        $region30: #{tpu_custom_call.1} parent=11 // pred_check_branch
          %223 = sbr.rel (%p221) target = $region32
        $region31: #{tpu_custom_call.1} parent=11 // pred_region
          _
        $region32: #{tpu_custom_call.1} parent=11 // pred_fallthru
          _
        // Predicated region
        $region33: #{tpu_custom_call.1} parent=11 // pred_check
          %p224 = pneg %p168
        $region34: #{tpu_custom_call.1} parent=11 // pred_check_branch
          %226 = sbr.rel (%p224) target = $region36
        $region35: #{tpu_custom_call.1} parent=11 // pred_region
          _
        $region36: #{tpu_custom_call.1} parent=11 // pred_fallthru
          _
      $region12: #{tpu_custom_call.1} parent=5 // pred_fallthru
        _
      %p227 = scmp.lt.s32.totalorder %s16, 2
      // Predicated region
      $region37: #{tpu_custom_call.1} parent=5 // pred_check
        %p228 = pneg %p227
      $region38: #{tpu_custom_call.1} parent=5 // pred_check_branch
        %230 = sbr.rel (%p228) target = $region40
      $region39: #{tpu_custom_call.1} parent=5 // pred_region
        // Predicated region
        $region41: #{tpu_custom_call.1} parent=39 // pred_check
          %p231 = pneg %p36
        $region42: #{tpu_custom_call.1} parent=39 // pred_check_branch
          %233 = sbr.rel (%p231) target = $region44
        $region43: #{tpu_custom_call.1} parent=39 // pred_region
          %p234 = scmp.lt.s32.totalorder %s16, 1
          %s235 = scalar_select %p234, %s16, 1
          %s236 = smul.addr %s235, 4
          %s237 = smul.addr %s236, 8
          %s238 = scalar_lea.vmem %s0, %s237
        $region44: #{tpu_custom_call.1} parent=39 // pred_fallthru
          _
      $region40: #{tpu_custom_call.1} parent=5 // pred_fallthru
        _
      %p239 = scmp.le.s32.totalorder 1, %s16
      %p240 = scmp.lt.s32.totalorder %s16, 3
      %p241 = pnand %p239, %p240
      %p242 = pneg %p241
      // Predicated region
      $region45: #{tpu_custom_call.1} parent=5 // pred_check
        _
      $region46: #{tpu_custom_call.1} parent=5 // pred_check_branch
        %244 = sbr.rel (%p241) target = $region48
      $region47: #{tpu_custom_call.1} parent=5 // pred_region
        %s245 = ssub.s32 %s16, 1
        %p246 = scmp.lt.s32.totalorder %s21, 1
        %s247 = scalar_select %p246, %s21, 1
        %s248 = smul.addr %s247, 4
        %s249 = smul.addr %s248, 8
        %s250 = scalar_lea.vmem %s0, %s249
        %p251 = pneg %p42
        %p252 = pneg %p39
        %p253 = pneg %p63
        %p254 = pneg %p60
        %p255 = pneg %p84
        %p256 = pneg %p81
        %p257 = pneg %p105
        %p258 = pneg %p102
        %p259 = pneg %p126
        %p260 = pneg %p123
        %p261 = pneg %p147
        %p262 = pneg %p144
        %p263 = pneg %p168
        %p264 = pneg %p165
        %p265 = pneg %p194
        %p266 = pneg %p191
        %s267 = sand.u32 %s181, 1
        %s268 = scalar_lea.sflag [#allocation3], %s267
        %s269 = sand.u32 %s181, 1
        %s270 = smul.addr %s269, 32
        %s271 = scalar_lea.vmem [#allocation2], %s270
        %p272 = scmp.lt.s32.totalorder %s21, 1
        %s273 = scalar_select %p272, %s21, 1
        %s274 = smul.addr %s273, 4
        %s275 = smul.addr %s274, 8
        %s276 = scalar_lea.vmem %s0, %s275
        %v277 = vld [vmem:[%s1] sm:$0xff]
        %v278 = vld [vmem:[%s1 + $0x8] sm:$0xff]
        %v279 = vld [vmem:[%s1 + $0x10] sm:$0xff]
        %v280 = vld [vmem:[%s1 + $0x18] sm:$0xff]
        %v281 = vld [vmem:[%s4] sm:$0xff]
        %v282 = vld [vmem:[%s4 + $0x8] sm:$0xff]
        %v283 = vld [vmem:[%s2] sm:$0xff]
        %v284 = vld [vmem:[%s2 + $0x8] sm:$0xff]
        %v285 = vld [vmem:[%s2 + $0x10] sm:$0xff]
        %v286 = vld [vmem:[%s2 + $0x18] sm:$0xff]
        %v287 = vld [vmem:[%s2 + $0x20] sm:$0xff]
        %v288 = vld [vmem:[%s6] sm:$0xff]
        %v289 = vld [vmem:[%s6 + $0x8] sm:$0xff]
        %v290 = vld [vmem:[%s6 + $0x10] sm:$0x1]
        %v291 = vld [vmem:[%s6 + $0x18] sm:$0x1]
        %v292 = vld [vmem:[%s3] sm:$0xff]
        %v293 = vld [vmem:[%s3 + $0x8] sm:$0xff]
        %v294 = vld [vmem:[%s3 + $0x10] sm:$0xff]
        %v295 = vld [vmem:[%s3 + $0x18] sm:$0xff]
        %v296 = vld [vmem:[%s3 + $0x20] sm:$0xff]
        %v297 = vld [vmem:[%s3 + $0x28] sm:$0xff]
        %v298 = vld [vmem:[%s3 + $0x30] sm:$0xff]
        %v299 = vld [vmem:[%s3 + $0x38] sm:$0xff]
        %v300 = vld [vmem:[%s3 + $0x40] sm:$0xff]
        %v301 = vld [vmem:[%s5] sm:$0xff]
        %v302 = vld [vmem:[%s5 + $0x8] sm:$0xff]
        %v303 = vld [vmem:[%s5 + $0x10] sm:$0xff]
        %v304 = vld [vmem:[%s5 + $0x18] sm:$0xff]
        %v305 = vld [vmem:[%s276] sm:$0xff]
        %v306 = vld [vmem:[%s276 + $0x8] sm:$0xff]
        %v307 = vld [vmem:[%s276 + $0x10] sm:$0xff]
        %v308 = vld [vmem:[%s276 + $0x18] sm:$0xff]
        %310 = vset.pattern.permute.xlu0 0
        %311 = vperm.xlu0 %310, %v292
        %v312 = vpop.permute.xlu0 %311
        %315 = vset.pattern.permute.xlu0 0
        %316 = vperm.xlu0 %315, %v293
        %v317 = vpop.permute.xlu0 %316
        %320 = vset.pattern.permute.xlu0 0
        %321 = vperm.xlu0 %320, %v294
        %v322 = vpop.permute.xlu0 %321
        %325 = vset.pattern.permute.xlu0 0
        %326 = vperm.xlu0 %325, %v295
        %v327 = vpop.permute.xlu0 %326
        %vm329 = vcmask 130048
        %v331 = vsel %vm329, %v277, 0
        %v334 = vsel %vm329, %v278, 0
        %v337 = vsel %vm329, %v279, 0
        %v340 = vsel %vm329, %v280, 0
        %342 = vmatprep.subr.mxu0 0.0
        %343 = vmatpush1.msra.mxu0 0.0
        %344 = vmatprep.subr.mxu0 0.0
        %345 = vmatpush1.msra.mxu0 0.0
        %346 = vmatprep.subr.mxu0 0.0
        %347 = vmatpush1.msra.mxu0 0.0
        %348 = vmatprep.subr.mxu0 0.0
        %349 = vmatpush1.msra.mxu0 0.0
        %350 = vmatprep.subr.mxu0 0.0
        %351 = vmatpush1.msra.mxu0 0.0
        %352 = vmatprep.subr.mxu0 0.0
        %353 = vmatpush1.msra.mxu0 0.0
        %354 = vmatprep.subr.mxu0 0.0
        %355 = vmatpush1.msra.mxu0 0.0
        %356 = vmatprep.subr.mxu0 0.0
        %357 = vmatpush1.msra.mxu0 0.0
        %358 = vmatprep.subr.mxu0 0.0
        %359 = vmatpush1.msra.mxu0 0.0
        %360 = vmatprep.subr.mxu0 0.0
        %361 = vmatpush1.msra.mxu0 0.0
        %362 = vmatprep.subr.mxu0 0.0
        %363 = vmatpush1.msra.mxu0 0.0
        %364 = vmatprep.subr.mxu0 0.0
        %365 = vmatpush1.msra.mxu0 0.0
        %366 = vmatprep.subr.mxu0 0.0
        %367 = vmatpush1.msra.mxu0 0.0
        %368 = vmatprep.subr.mxu0 0.0
        %369 = vmatpush1.msra.mxu0 0.0
        %370 = vmatprep.subr.mxu0 %v308
        %371 = vmatpush1.msra.mxu0 %v307
        %372 = vmatprep.subr.mxu0 %v306
        %373 = vmatpush1.msra.mxu0 %v305
        %374 = vmatprep.subr.mxu0 0.0
        %375 = vmatpush2.msra.mxu0 0.0
        %376 = vmatprep.subr.mxu0 0.0
        %377 = vmatpush2.msra.mxu0 0.0
        %378 = vmatprep.subr.mxu0 0.0
        %379 = vmatpush2.msra.mxu0 0.0
        %380 = vmatprep.subr.mxu0 0.0
        %381 = vmatpush2.msra.mxu0 0.0
        %382 = vmatprep.subr.mxu0 0.0
        %383 = vmatpush2.msra.mxu0 0.0
        %384 = vmatprep.subr.mxu0 0.0
        %385 = vmatpush2.msra.mxu0 0.0
        %386 = vmatprep.subr.mxu0 0.0
        %387 = vmatpush2.msra.mxu0 0.0
        %388 = vmatprep.subr.mxu0 0.0
        %389 = vmatpush2.msra.mxu0 0.0
        %390 = vmatprep.subr.mxu0 0.0
        %391 = vmatpush2.msra.mxu0 0.0
        %392 = vmatprep.subr.mxu0 0.0
        %393 = vmatpush2.msra.mxu0 0.0
        %394 = vmatprep.subr.mxu0 0.0
        %395 = vmatpush2.msra.mxu0 0.0
        %396 = vmatprep.subr.mxu0 0.0
        %397 = vmatpush2.msra.mxu0 0.0
        %398 = vmatprep.subr.mxu0 0.0
        %399 = vmatpush2.msra.mxu0 0.0
        %400 = vmatprep.subr.mxu0 0.0
        %401 = vmatpush2.msra.mxu0 0.0
        %402 = vmatprep.subr.mxu0 0.0
        %403 = vmatpush2.msra.mxu0 0.0
        %404 = vmatprep.subr.mxu0 0.0
        %405 = vmatpush2.msra.mxu0 0.0
        %406 = vmatprep.mubr.f32.mxu0 0.0
        %407 = vmatmul.mubr.f32.gmra.mxu0 %v331
        %v408 = vpop.f32.mrf.mxu0
        %v409 = vadd.f32 %v312, %v408
        %v410 = vpop.f32.mrf.mxu0
        %v411 = vadd.f32 %v312, %v410
        %412 = vmatprep.mubr.f32.mxu0 0.0
        %413 = vmatmul.mubr.f32.gmra.mxu0 %v334
        %v414 = vpop.f32.mrf.mxu0
        %v415 = vadd.f32 %v317, %v414
        %v416 = vpop.f32.mrf.mxu0
        %v417 = vadd.f32 %v317, %v416
        %418 = vmatprep.mubr.f32.mxu0 0.0
        %419 = vmatmul.mubr.f32.gmra.mxu0 %v337
        %v420 = vpop.f32.mrf.mxu0
        %v421 = vadd.f32 %v322, %v420
        %v422 = vpop.f32.mrf.mxu0
        %v423 = vadd.f32 %v322, %v422
        %424 = vmatprep.mubr.f32.mxu0 0.0
        %425 = vmatmul.mubr.f32.gmra.mxu0 %v340
        %v426 = vpop.f32.mrf.mxu0
        %v427 = vadd.f32 %v327, %v426
        %v428 = vpop.f32.mrf.mxu0
        %v429 = vadd.f32 %v327, %v428
        %430 = vdwg.mxu0
        %v431 = vmax.f32 %v409, 0.0
        %v432 = vmax.f32 %v411, 0.0
        %v433 = vmax.f32 %v415, 0.0
        %v434 = vmax.f32 %v417, 0.0
        %v435 = vmax.f32 %v421, 0.0
        %v436 = vmax.f32 %v423, 0.0
        %v437 = vmax.f32 %v427, 0.0
        %v438 = vmax.f32 %v429, 0.0
        %440 = vset.pattern.permute.xlu0 4
        %441 = vperm.xlu0 %440, %v283
        %v442 = vpop.permute.xlu0 %441
        %v444 = vmul.f32 %v433, %v442
        %v445 = vmul.f32 %v434, %v442
        %446 = vrot.lane.b32.xlu0 %v433, 17
        %v447 = vpop.permute.xlu0 %446
        %448 = vrot.lane.b32.xlu0 %v434, 17
        %v449 = vpop.permute.xlu0 %448
        %v450 = vlaneseq
        %v451 = vand.u32 %v450, 127
        %vm452 = vcmp.lt.s32.totalorder %v451, 17
        %v453 = vsel %vm452, %v447, %v449
        %v454 = vsel %vm452, %v449, %v447
        %v455 = vlaneseq
        %v456 = vshrl.u32 %v455, 7
        %v457 = vsub.s32 0, %v456
        %v458 = vrot.slane %v288, %v457
        %v459 = vlaneseq
        %v460 = vshrl.u32 %v459, 7
        %v461 = vsub.s32 0, %v460
        %v462 = vrot.slane %v289, %v461
        %v463 = vmul.f32 %v454, %v458
        %v464 = vmul.f32 %v453, %v462
        %465 = vset.pattern.permute.xlu0 0
        %466 = vperm.xlu0 %465, %v283
        %v467 = vpop.permute.xlu0 %466
        %v469 = vmul.f32 %v463, %v467
        %v470 = vmul.f32 %v464, %v467
        %v471 = vadd.f32 %v444, %v469
        %v472 = vadd.f32 %v445, %v470
        %473 = vrot.lane.b32.xlu0 %v433, 16
        %v474 = vpop.permute.xlu0 %473
        %475 = vrot.lane.b32.xlu0 %v434, 16
        %v476 = vpop.permute.xlu0 %475
        %vm477 = vcmp.lt.s32.totalorder %v451, 16
        %v478 = vsel %vm477, %v474, %v476
        %v479 = vsel %vm477, %v476, %v474
        %v480 = vlaneseq
        %v481 = vshrl.u32 %v480, 7
        %v482 = vsub.s32 1, %v481
        %v483 = vrot.slane %v288, %v482
        %v484 = vlaneseq
        %v485 = vshrl.u32 %v484, 7
        %v486 = vsub.s32 1, %v485
        %v487 = vrot.slane %v289, %v486
        %v488 = vmul.f32 %v479, %v483
        %v489 = vmul.f32 %v478, %v487
        %490 = vset.pattern.permute.xlu0 1
        %491 = vperm.xlu0 %490, %v283
        %v492 = vpop.permute.xlu0 %491
        %v494 = vmul.f32 %v488, %v492
        %v495 = vmul.f32 %v489, %v492
        %v496 = vadd.f32 %v471, %v494
        %v497 = vadd.f32 %v472, %v495
        %498 = vrot.lane.b32.xlu0 %v433, 15
        %v499 = vpop.permute.xlu0 %498
        %500 = vrot.lane.b32.xlu0 %v434, 15
        %v501 = vpop.permute.xlu0 %500
        %vm502 = vcmp.lt.s32.totalorder %v451, 15
        %v503 = vsel %vm502, %v499, %v501
        %v504 = vsel %vm502, %v501, %v499
        %v505 = vlaneseq
        %v506 = vshrl.u32 %v505, 7
        %v507 = vsub.s32 2, %v506
        %v508 = vrot.slane %v288, %v507
        %v509 = vlaneseq
        %v510 = vshrl.u32 %v509, 7
        %v511 = vsub.s32 2, %v510
        %v512 = vrot.slane %v289, %v511
        %v513 = vmul.f32 %v504, %v508
        %v514 = vmul.f32 %v503, %v512
        %515 = vset.pattern.permute.xlu0 2
        %516 = vperm.xlu0 %515, %v283
        %v517 = vpop.permute.xlu0 %516
        %v519 = vmul.f32 %v513, %v517
        %v520 = vmul.f32 %v514, %v517
        %v521 = vadd.f32 %v496, %v519
        %v522 = vadd.f32 %v497, %v520
        %523 = vrot.lane.b32.xlu0 %v433, 1
        %v524 = vpop.permute.xlu0 %523
        %525 = vrot.lane.b32.xlu0 %v434, 1
        %v526 = vpop.permute.xlu0 %525
        %vm527 = vcmp.lt.s32.totalorder %v451, 1
        %v528 = vsel %vm527, %v524, %v526
        %v529 = vsel %vm527, %v526, %v524
        %v530 = vlaneseq
        %v531 = vshrl.u32 %v530, 7
        %v532 = vsub.s32 3, %v531
        %v533 = vrot.slane %v288, %v532
        %v534 = vlaneseq
        %v535 = vshrl.u32 %v534, 7
        %v536 = vsub.s32 3, %v535
        %v537 = vrot.slane %v289, %v536
        %v538 = vmul.f32 %v529, %v533
        %v539 = vmul.f32 %v528, %v537
        %540 = vset.pattern.permute.xlu0 3
        %541 = vperm.xlu0 %540, %v283
        %v542 = vpop.permute.xlu0 %541
        %v544 = vmul.f32 %v538, %v542
        %v545 = vmul.f32 %v539, %v542
        %v546 = vadd.f32 %v521, %v544
        %v547 = vadd.f32 %v522, %v545
        %548 = vrot.lane.b32.xlu0 %v433, 127
        %v549 = vpop.permute.xlu0 %548
        %550 = vrot.lane.b32.xlu0 %v434, 127
        %v551 = vpop.permute.xlu0 %550
        %vm552 = vcmp.lt.s32.totalorder %v451, 127
        %v553 = vsel %vm552, %v549, %v551
        %v554 = vsel %vm552, %v551, %v549
        %v555 = vlaneseq
        %v556 = vshrl.u32 %v555, 7
        %v557 = vsub.s32 5, %v556
        %v558 = vrot.slane %v288, %v557
        %v559 = vlaneseq
        %v560 = vshrl.u32 %v559, 7
        %v561 = vsub.s32 5, %v560
        %v562 = vrot.slane %v289, %v561
        %v563 = vmul.f32 %v553, %v558
        %v564 = vmul.f32 %v554, %v562
        %565 = vset.pattern.permute.xlu0 5
        %566 = vperm.xlu0 %565, %v283
        %v567 = vpop.permute.xlu0 %566
        %v569 = vmul.f32 %v563, %v567
        %v570 = vmul.f32 %v564, %v567
        %v571 = vadd.f32 %v546, %v569
        %v572 = vadd.f32 %v547, %v570
        %573 = vrot.lane.b32.xlu0 %v433, 113
        %v574 = vpop.permute.xlu0 %573
        %575 = vrot.lane.b32.xlu0 %v434, 113
        %v576 = vpop.permute.xlu0 %575
        %vm577 = vcmp.lt.s32.totalorder %v451, 113
        %v578 = vsel %vm577, %v574, %v576
        %v579 = vsel %vm577, %v576, %v574
        %v580 = vlaneseq
        %v581 = vshrl.u32 %v580, 7
        %v582 = vsub.s32 6, %v581
        %v583 = vrot.slane %v288, %v582
        %v584 = vlaneseq
        %v585 = vshrl.u32 %v584, 7
        %v586 = vsub.s32 6, %v585
        %v587 = vrot.slane %v289, %v586
        %v588 = vmul.f32 %v578, %v583
        %v589 = vmul.f32 %v579, %v587
        %590 = vset.pattern.permute.xlu0 6
        %591 = vperm.xlu0 %590, %v283
        %v592 = vpop.permute.xlu0 %591
        %v594 = vmul.f32 %v588, %v592
        %v595 = vmul.f32 %v589, %v592
        %v596 = vadd.f32 %v571, %v594
        %v597 = vadd.f32 %v572, %v595
        %598 = vrot.lane.b32.xlu0 %v433, 112
        %v599 = vpop.permute.xlu0 %598
        %600 = vrot.lane.b32.xlu0 %v434, 112
        %v601 = vpop.permute.xlu0 %600
        %vm602 = vcmp.lt.s32.totalorder %v451, 112
        %v603 = vsel %vm602, %v599, %v601
        %v604 = vsel %vm602, %v601, %v599
        %v605 = vlaneseq
        %v606 = vshrl.u32 %v605, 7
        %v607 = vsub.s32 7, %v606
        %v608 = vrot.slane %v288, %v607
        %v609 = vlaneseq
        %v610 = vshrl.u32 %v609, 7
        %v611 = vsub.s32 7, %v610
        %v612 = vrot.slane %v289, %v611
        %v613 = vmul.f32 %v603, %v608
        %v614 = vmul.f32 %v604, %v612
        %615 = vset.pattern.permute.xlu0 7
        %616 = vperm.xlu0 %615, %v283
        %v617 = vpop.permute.xlu0 %616
        %v619 = vmul.f32 %v613, %v617
        %v620 = vmul.f32 %v614, %v617
        %v621 = vadd.f32 %v596, %v619
        %v622 = vadd.f32 %v597, %v620
        %623 = vrot.lane.b32.xlu0 %v433, 111
        %v624 = vpop.permute.xlu0 %623
        %625 = vrot.lane.b32.xlu0 %v434, 111
        %v626 = vpop.permute.xlu0 %625
        %vm627 = vcmp.lt.s32.totalorder %v451, 111
        %v628 = vsel %vm627, %v624, %v626
        %v629 = vsel %vm627, %v626, %v624
        %v630 = vlaneseq
        %v631 = vshrl.u32 %v630, 7
        %v632 = vsub.s32 0, %v631
        %v633 = vrot.slane %v290, %v632
        %v634 = vlaneseq
        %v635 = vshrl.u32 %v634, 7
        %v636 = vsub.s32 0, %v635
        %v637 = vrot.slane %v291, %v636
        %v638 = vmul.f32 %v628, %v633
        %v639 = vmul.f32 %v629, %v637
        %640 = vset.pattern.permute.xlu0 8
        %641 = vperm.xlu0 %640, %v283
        %v642 = vpop.permute.xlu0 %641
        %v644 = vmul.f32 %v638, %v642
        %v645 = vmul.f32 %v639, %v642
        %v646 = vadd.f32 %v621, %v644
        %v647 = vadd.f32 %v622, %v645
        %649 = vset.pattern.permute.xlu0 0
        %650 = vperm.xlu0 %649, %v296
        %v651 = vpop.permute.xlu0 %650
        %v653 = vadd.f32 %v646, %v651
        %v654 = vadd.f32 %v647, %v651
        %v655 = vmax.f32 %v653, 0.0
        %v656 = vmax.f32 %v654, 0.0
        %v659 = vrot.slane %v435, 6
        %v660 = vrot.slane %v436, 6
        %v665 = vrot.slane %v655, 6
        %v666 = vrot.slane %v656, 6
        %v669 = vrot.slane %v435, 4
        %v670 = vrot.slane %v436, 4
        %v673 = vrot.slane %v655, 4
        %v674 = vrot.slane %v656, 4
        %v677 = vrot.slane %v435, 2
        %v678 = vrot.slane %v436, 2
        %v681 = vrot.slane %v655, 2
        %v682 = vrot.slane %v656, 2
        %vm685 = vcmask 1041408
        %v686 = vsel %vm685, %v655, %v659
        %v687 = vsel %vm685, %v656, %v660
        %vm688 = vcmask 1043456
        %v689 = vsel %vm688, %v686, %v665
        %v690 = vsel %vm688, %v687, %v666
        %vm691 = vcmask 1045504
        %v692 = vsel %vm691, %v689, %v669
        %v693 = vsel %vm691, %v690, %v670
        %v694 = vsel %vm685, %v673, %v677
        %v695 = vsel %vm685, %v674, %v678
        %v696 = vsel %vm688, %v694, %v681
        %v697 = vsel %vm688, %v695, %v682
        %v698 = vsel %vm691, %v696, %v435
        %v699 = vsel %vm691, %v697, %v436
        %701 = vset.pattern.permute.xlu0 4
        %702 = vperm.xlu0 %701, %v284
        %v703 = vpop.permute.xlu0 %702
        %706 = vset.pattern.permute.xlu0 4
        %707 = vperm.xlu0 %706, %v285
        %v708 = vpop.permute.xlu0 %707
        %v710 = vmul.f32 %v692, %v703
        %v711 = vmul.f32 %v693, %v703
        %v712 = vmul.f32 %v698, %v708
        %v713 = vmul.f32 %v699, %v708
        %714 = vrot.lane.b32.xlu0 %v692, 17
        %v715 = vpop.permute.xlu0 %714
        %716 = vrot.lane.b32.xlu0 %v698, 17
        %v717 = vpop.permute.xlu0 %716
        %718 = vrot.lane.b32.xlu0 %v693, 17
        %v719 = vpop.permute.xlu0 %718
        %720 = vrot.lane.b32.xlu0 %v699, 17
        %v721 = vpop.permute.xlu0 %720
        %v722 = vsel %vm452, %v715, %v719
        %v723 = vsel %vm452, %v717, %v721
        %v724 = vsel %vm452, %v719, %v715
        %v725 = vsel %vm452, %v721, %v717
        %v726 = vmul.f32 %v724, %v458
        %v727 = vmul.f32 %v722, %v462
        %v728 = vmul.f32 %v725, %v458
        %v729 = vmul.f32 %v723, %v462
        %730 = vset.pattern.permute.xlu0 0
        %731 = vperm.xlu0 %730, %v284
        %v732 = vpop.permute.xlu0 %731
        %734 = vset.pattern.permute.xlu0 0
        %735 = vperm.xlu0 %734, %v285
        %v736 = vpop.permute.xlu0 %735
        %v738 = vmul.f32 %v726, %v732
        %v739 = vmul.f32 %v727, %v732
        %v740 = vmul.f32 %v728, %v736
        %v741 = vmul.f32 %v729, %v736
        %v742 = vadd.f32 %v710, %v738
        %v743 = vadd.f32 %v711, %v739
        %v744 = vadd.f32 %v712, %v740
        %v745 = vadd.f32 %v713, %v741
        %746 = vrot.lane.b32.xlu0 %v692, 16
        %v747 = vpop.permute.xlu0 %746
        %748 = vrot.lane.b32.xlu0 %v698, 16
        %v749 = vpop.permute.xlu0 %748
        %750 = vrot.lane.b32.xlu0 %v693, 16
        %v751 = vpop.permute.xlu0 %750
        %752 = vrot.lane.b32.xlu0 %v699, 16
        %v753 = vpop.permute.xlu0 %752
        %v754 = vsel %vm477, %v747, %v751
        %v755 = vsel %vm477, %v749, %v753
        %v756 = vsel %vm477, %v751, %v747
        %v757 = vsel %vm477, %v753, %v749
        %v758 = vmul.f32 %v756, %v483
        %v759 = vmul.f32 %v754, %v487
        %v760 = vmul.f32 %v757, %v483
        %v761 = vmul.f32 %v755, %v487
        %762 = vset.pattern.permute.xlu0 1
        %763 = vperm.xlu0 %762, %v284
        %v764 = vpop.permute.xlu0 %763
        %766 = vset.pattern.permute.xlu0 1
        %767 = vperm.xlu0 %766, %v285
        %v768 = vpop.permute.xlu0 %767
        %v770 = vmul.f32 %v758, %v764
        %v771 = vmul.f32 %v759, %v764
        %v772 = vmul.f32 %v760, %v768
        %v773 = vmul.f32 %v761, %v768
        %v774 = vadd.f32 %v742, %v770
        %v775 = vadd.f32 %v743, %v771
        %v776 = vadd.f32 %v744, %v772
        %v777 = vadd.f32 %v745, %v773
        %778 = vrot.lane.b32.xlu0 %v692, 15
        %v779 = vpop.permute.xlu0 %778
        %780 = vrot.lane.b32.xlu0 %v698, 15
        %v781 = vpop.permute.xlu0 %780
        %782 = vrot.lane.b32.xlu0 %v693, 15
        %v783 = vpop.permute.xlu0 %782
        %784 = vrot.lane.b32.xlu0 %v699, 15
        %v785 = vpop.permute.xlu0 %784
        %v786 = vsel %vm502, %v779, %v783
        %v787 = vsel %vm502, %v781, %v785
        %v788 = vsel %vm502, %v783, %v779
        %v789 = vsel %vm502, %v785, %v781
        %v790 = vmul.f32 %v788, %v508
        %v791 = vmul.f32 %v786, %v512
        %v792 = vmul.f32 %v789, %v508
        %v793 = vmul.f32 %v787, %v512
        %794 = vset.pattern.permute.xlu0 2
        %795 = vperm.xlu0 %794, %v284
        %v796 = vpop.permute.xlu0 %795
        %798 = vset.pattern.permute.xlu0 2
        %799 = vperm.xlu0 %798, %v285
        %v800 = vpop.permute.xlu0 %799
        %v802 = vmul.f32 %v790, %v796
        %v803 = vmul.f32 %v791, %v796
        %v804 = vmul.f32 %v792, %v800
        %v805 = vmul.f32 %v793, %v800
        %v806 = vadd.f32 %v774, %v802
        %v807 = vadd.f32 %v775, %v803
        %v808 = vadd.f32 %v776, %v804
        %v809 = vadd.f32 %v777, %v805
        %810 = vrot.lane.b32.xlu0 %v692, 1
        %v811 = vpop.permute.xlu0 %810
        %812 = vrot.lane.b32.xlu0 %v698, 1
        %v813 = vpop.permute.xlu0 %812
        %814 = vrot.lane.b32.xlu0 %v693, 1
        %v815 = vpop.permute.xlu0 %814
        %816 = vrot.lane.b32.xlu0 %v699, 1
        %v817 = vpop.permute.xlu0 %816
        %v818 = vsel %vm527, %v811, %v815
        %v819 = vsel %vm527, %v813, %v817
        %v820 = vsel %vm527, %v815, %v811
        %v821 = vsel %vm527, %v817, %v813
        %v822 = vmul.f32 %v820, %v533
        %v823 = vmul.f32 %v818, %v537
        %v824 = vmul.f32 %v821, %v533
        %v825 = vmul.f32 %v819, %v537
        %826 = vset.pattern.permute.xlu0 3
        %827 = vperm.xlu0 %826, %v284
        %v828 = vpop.permute.xlu0 %827
        %830 = vset.pattern.permute.xlu0 3
        %831 = vperm.xlu0 %830, %v285
        %v832 = vpop.permute.xlu0 %831
        %v834 = vmul.f32 %v822, %v828
        %v835 = vmul.f32 %v823, %v828
        %v836 = vmul.f32 %v824, %v832
        %v837 = vmul.f32 %v825, %v832
        %v838 = vadd.f32 %v806, %v834
        %v839 = vadd.f32 %v807, %v835
        %v840 = vadd.f32 %v808, %v836
        %v841 = vadd.f32 %v809, %v837
        %842 = vrot.lane.b32.xlu0 %v692, 127
        %v843 = vpop.permute.xlu0 %842
        %844 = vrot.lane.b32.xlu0 %v698, 127
        %v845 = vpop.permute.xlu0 %844
        %846 = vrot.lane.b32.xlu0 %v693, 127
        %v847 = vpop.permute.xlu0 %846
        %848 = vrot.lane.b32.xlu0 %v699, 127
        %v849 = vpop.permute.xlu0 %848
        %v850 = vsel %vm552, %v843, %v847
        %v851 = vsel %vm552, %v845, %v849
        %v852 = vsel %vm552, %v847, %v843
        %v853 = vsel %vm552, %v849, %v845
        %v854 = vmul.f32 %v850, %v558
        %v855 = vmul.f32 %v852, %v562
        %v856 = vmul.f32 %v851, %v558
        %v857 = vmul.f32 %v853, %v562
        %858 = vset.pattern.permute.xlu0 5
        %859 = vperm.xlu0 %858, %v284
        %v860 = vpop.permute.xlu0 %859
        %862 = vset.pattern.permute.xlu0 5
        %863 = vperm.xlu0 %862, %v285
        %v864 = vpop.permute.xlu0 %863
        %v866 = vmul.f32 %v854, %v860
        %v867 = vmul.f32 %v855, %v860
        %v868 = vmul.f32 %v856, %v864
        %v869 = vmul.f32 %v857, %v864
        %v870 = vadd.f32 %v838, %v866
        %v871 = vadd.f32 %v839, %v867
        %v872 = vadd.f32 %v840, %v868
        %v873 = vadd.f32 %v841, %v869
        %874 = vrot.lane.b32.xlu0 %v692, 113
        %v875 = vpop.permute.xlu0 %874
        %876 = vrot.lane.b32.xlu0 %v698, 113
        %v877 = vpop.permute.xlu0 %876
        %878 = vrot.lane.b32.xlu0 %v693, 113
        %v879 = vpop.permute.xlu0 %878
        %880 = vrot.lane.b32.xlu0 %v699, 113
        %v881 = vpop.permute.xlu0 %880
        %v882 = vsel %vm577, %v875, %v879
        %v883 = vsel %vm577, %v877, %v881
        %v884 = vsel %vm577, %v879, %v875
        %v885 = vsel %vm577, %v881, %v877
        %v886 = vmul.f32 %v882, %v583
        %v887 = vmul.f32 %v884, %v587
        %v888 = vmul.f32 %v883, %v583
        %v889 = vmul.f32 %v885, %v587
        %890 = vset.pattern.permute.xlu0 6
        %891 = vperm.xlu0 %890, %v284
        %v892 = vpop.permute.xlu0 %891
        %894 = vset.pattern.permute.xlu0 6
        %895 = vperm.xlu0 %894, %v285
        %v896 = vpop.permute.xlu0 %895
        %v898 = vmul.f32 %v886, %v892
        %v899 = vmul.f32 %v887, %v892
        %v900 = vmul.f32 %v888, %v896
        %v901 = vmul.f32 %v889, %v896
        %v902 = vadd.f32 %v870, %v898
        %v903 = vadd.f32 %v871, %v899
        %v904 = vadd.f32 %v872, %v900
        %v905 = vadd.f32 %v873, %v901
        %906 = vrot.lane.b32.xlu0 %v692, 112
        %v907 = vpop.permute.xlu0 %906
        %908 = vrot.lane.b32.xlu0 %v698, 112
        %v909 = vpop.permute.xlu0 %908
        %910 = vrot.lane.b32.xlu0 %v693, 112
        %v911 = vpop.permute.xlu0 %910
        %912 = vrot.lane.b32.xlu0 %v699, 112
        %v913 = vpop.permute.xlu0 %912
        %v914 = vsel %vm602, %v907, %v911
        %v915 = vsel %vm602, %v909, %v913
        %v916 = vsel %vm602, %v911, %v907
        %v917 = vsel %vm602, %v913, %v909
        %v918 = vmul.f32 %v914, %v608
        %v919 = vmul.f32 %v916, %v612
        %v920 = vmul.f32 %v915, %v608
        %v921 = vmul.f32 %v917, %v612
        %922 = vset.pattern.permute.xlu0 7
        %923 = vperm.xlu0 %922, %v284
        %v924 = vpop.permute.xlu0 %923
        %926 = vset.pattern.permute.xlu0 7
        %927 = vperm.xlu0 %926, %v285
        %v928 = vpop.permute.xlu0 %927
        %v930 = vmul.f32 %v918, %v924
        %v931 = vmul.f32 %v919, %v924
        %v932 = vmul.f32 %v920, %v928
        %v933 = vmul.f32 %v921, %v928
        %v934 = vadd.f32 %v902, %v930
        %v935 = vadd.f32 %v903, %v931
        %v936 = vadd.f32 %v904, %v932
        %v937 = vadd.f32 %v905, %v933
        %938 = vrot.lane.b32.xlu0 %v692, 111
        %v939 = vpop.permute.xlu0 %938
        %940 = vrot.lane.b32.xlu0 %v698, 111
        %v941 = vpop.permute.xlu0 %940
        %942 = vrot.lane.b32.xlu0 %v693, 111
        %v943 = vpop.permute.xlu0 %942
        %944 = vrot.lane.b32.xlu0 %v699, 111
        %v945 = vpop.permute.xlu0 %944
        %v946 = vsel %vm627, %v939, %v943
        %v947 = vsel %vm627, %v941, %v945
        %v948 = vsel %vm627, %v943, %v939
        %v949 = vsel %vm627, %v945, %v941
        %v950 = vmul.f32 %v946, %v633
        %v951 = vmul.f32 %v948, %v637
        %v952 = vmul.f32 %v947, %v633
        %v953 = vmul.f32 %v949, %v637
        %954 = vset.pattern.permute.xlu0 8
        %955 = vperm.xlu0 %954, %v284
        %v956 = vpop.permute.xlu0 %955
        %958 = vset.pattern.permute.xlu0 8
        %959 = vperm.xlu0 %958, %v285
        %v960 = vpop.permute.xlu0 %959
        %v962 = vmul.f32 %v950, %v956
        %v963 = vmul.f32 %v951, %v956
        %v964 = vmul.f32 %v952, %v960
        %v965 = vmul.f32 %v953, %v960
        %v966 = vadd.f32 %v934, %v962
        %v967 = vadd.f32 %v935, %v963
        %v968 = vadd.f32 %v936, %v964
        %v969 = vadd.f32 %v937, %v965
        %v970 = vadd.f32 %v966, %v968
        %v971 = vadd.f32 %v967, %v969
        %973 = vset.pattern.permute.xlu0 0
        %974 = vperm.xlu0 %973, %v297
        %v975 = vpop.permute.xlu0 %974
        %v977 = vadd.f32 %v970, %v975
        %v978 = vadd.f32 %v971, %v975
        %v979 = vmax.f32 %v977, 0.0
        %v980 = vmax.f32 %v978, 0.0
        %v983 = vrot.slane %v437, 4
        %v984 = vrot.slane %v438, 4
        %v989 = vrot.slane %v979, 4
        %v990 = vrot.slane %v980, 4
        %v993 = vsel %vm688, %v979, %v983
        %v994 = vsel %vm688, %v980, %v984
        %v995 = vsel %vm688, %v989, %v437
        %v996 = vsel %vm688, %v990, %v438
        %998 = vset.pattern.permute.xlu0 4
        %999 = vperm.xlu0 %998, %v286
        %v1000 = vpop.permute.xlu0 %999
        %1003 = vset.pattern.permute.xlu0 4
        %1004 = vperm.xlu0 %1003, %v287
        %v1005 = vpop.permute.xlu0 %1004
        %v1007 = vmul.f32 %v993, %v1000
        %v1008 = vmul.f32 %v994, %v1000
        %v1009 = vmul.f32 %v995, %v1005
        %v1010 = vmul.f32 %v996, %v1005
        %1011 = vrot.lane.b32.xlu0 %v993, 17
        %v1012 = vpop.permute.xlu0 %1011
        %1013 = vrot.lane.b32.xlu0 %v995, 17
        %v1014 = vpop.permute.xlu0 %1013
        %1015 = vrot.lane.b32.xlu0 %v994, 17
        %v1016 = vpop.permute.xlu0 %1015
        %1017 = vrot.lane.b32.xlu0 %v996, 17
        %v1018 = vpop.permute.xlu0 %1017
        %v1019 = vsel %vm452, %v1012, %v1016
        %v1020 = vsel %vm452, %v1014, %v1018
        %v1021 = vsel %vm452, %v1016, %v1012
        %v1022 = vsel %vm452, %v1018, %v1014
        %v1023 = vmul.f32 %v1021, %v458
        %v1024 = vmul.f32 %v1019, %v462
        %v1025 = vmul.f32 %v1022, %v458
        %v1026 = vmul.f32 %v1020, %v462
        %1027 = vset.pattern.permute.xlu0 0
        %1028 = vperm.xlu0 %1027, %v286
        %v1029 = vpop.permute.xlu0 %1028
        %1031 = vset.pattern.permute.xlu0 0
        %1032 = vperm.xlu0 %1031, %v287
        %v1033 = vpop.permute.xlu0 %1032
        %v1035 = vmul.f32 %v1023, %v1029
        %v1036 = vmul.f32 %v1024, %v1029
        %v1037 = vmul.f32 %v1025, %v1033
        %v1038 = vmul.f32 %v1026, %v1033
        %v1039 = vadd.f32 %v1007, %v1035
        %v1040 = vadd.f32 %v1008, %v1036
        %v1041 = vadd.f32 %v1009, %v1037
        %v1042 = vadd.f32 %v1010, %v1038
        %1043 = vrot.lane.b32.xlu0 %v993, 16
        %v1044 = vpop.permute.xlu0 %1043
        %1045 = vrot.lane.b32.xlu0 %v995, 16
        %v1046 = vpop.permute.xlu0 %1045
        %1047 = vrot.lane.b32.xlu0 %v994, 16
        %v1048 = vpop.permute.xlu0 %1047
        %1049 = vrot.lane.b32.xlu0 %v996, 16
        %v1050 = vpop.permute.xlu0 %1049
        %v1051 = vsel %vm477, %v1044, %v1048
        %v1052 = vsel %vm477, %v1046, %v1050
        %v1053 = vsel %vm477, %v1048, %v1044
        %v1054 = vsel %vm477, %v1050, %v1046
        %v1055 = vmul.f32 %v1053, %v483
        %v1056 = vmul.f32 %v1051, %v487
        %v1057 = vmul.f32 %v1054, %v483
        %v1058 = vmul.f32 %v1052, %v487
        %1059 = vset.pattern.permute.xlu0 1
        %1060 = vperm.xlu0 %1059, %v286
        %v1061 = vpop.permute.xlu0 %1060
        %1063 = vset.pattern.permute.xlu0 1
        %1064 = vperm.xlu0 %1063, %v287
        %v1065 = vpop.permute.xlu0 %1064
        %v1067 = vmul.f32 %v1055, %v1061
        %v1068 = vmul.f32 %v1056, %v1061
        %v1069 = vmul.f32 %v1057, %v1065
        %v1070 = vmul.f32 %v1058, %v1065
        %v1071 = vadd.f32 %v1039, %v1067
        %v1072 = vadd.f32 %v1040, %v1068
        %v1073 = vadd.f32 %v1041, %v1069
        %v1074 = vadd.f32 %v1042, %v1070
        %1075 = vrot.lane.b32.xlu0 %v993, 15
        %v1076 = vpop.permute.xlu0 %1075
        %1077 = vrot.lane.b32.xlu0 %v995, 15
        %v1078 = vpop.permute.xlu0 %1077
        %1079 = vrot.lane.b32.xlu0 %v994, 15
        %v1080 = vpop.permute.xlu0 %1079
        %1081 = vrot.lane.b32.xlu0 %v996, 15
        %v1082 = vpop.permute.xlu0 %1081
        %v1083 = vsel %vm502, %v1076, %v1080
        %v1084 = vsel %vm502, %v1078, %v1082
        %v1085 = vsel %vm502, %v1080, %v1076
        %v1086 = vsel %vm502, %v1082, %v1078
        %v1087 = vmul.f32 %v1085, %v508
        %v1088 = vmul.f32 %v1083, %v512
        %v1089 = vmul.f32 %v1086, %v508
        %v1090 = vmul.f32 %v1084, %v512
        %1091 = vset.pattern.permute.xlu0 2
        %1092 = vperm.xlu0 %1091, %v286
        %v1093 = vpop.permute.xlu0 %1092
        %1095 = vset.pattern.permute.xlu0 2
        %1096 = vperm.xlu0 %1095, %v287
        %v1097 = vpop.permute.xlu0 %1096
        %v1099 = vmul.f32 %v1087, %v1093
        %v1100 = vmul.f32 %v1088, %v1093
        %v1101 = vmul.f32 %v1089, %v1097
        %v1102 = vmul.f32 %v1090, %v1097
        %v1103 = vadd.f32 %v1071, %v1099
        %v1104 = vadd.f32 %v1072, %v1100
        %v1105 = vadd.f32 %v1073, %v1101
        %v1106 = vadd.f32 %v1074, %v1102
        %1107 = vrot.lane.b32.xlu0 %v993, 1
        %v1108 = vpop.permute.xlu0 %1107
        %1109 = vrot.lane.b32.xlu0 %v995, 1
        %v1110 = vpop.permute.xlu0 %1109
        %1111 = vrot.lane.b32.xlu0 %v994, 1
        %v1112 = vpop.permute.xlu0 %1111
        %1113 = vrot.lane.b32.xlu0 %v996, 1
        %v1114 = vpop.permute.xlu0 %1113
        %v1115 = vsel %vm527, %v1108, %v1112
        %v1116 = vsel %vm527, %v1110, %v1114
        %v1117 = vsel %vm527, %v1112, %v1108
        %v1118 = vsel %vm527, %v1114, %v1110
        %v1119 = vmul.f32 %v1117, %v533
        %v1120 = vmul.f32 %v1115, %v537
        %v1121 = vmul.f32 %v1118, %v533
        %v1122 = vmul.f32 %v1116, %v537
        %1123 = vset.pattern.permute.xlu0 3
        %1124 = vperm.xlu0 %1123, %v286
        %v1125 = vpop.permute.xlu0 %1124
        %1127 = vset.pattern.permute.xlu0 3
        %1128 = vperm.xlu0 %1127, %v287
        %v1129 = vpop.permute.xlu0 %1128
        %v1131 = vmul.f32 %v1119, %v1125
        %v1132 = vmul.f32 %v1120, %v1125
        %v1133 = vmul.f32 %v1121, %v1129
        %v1134 = vmul.f32 %v1122, %v1129
        %v1135 = vadd.f32 %v1103, %v1131
        %v1136 = vadd.f32 %v1104, %v1132
        %v1137 = vadd.f32 %v1105, %v1133
        %v1138 = vadd.f32 %v1106, %v1134
        %1139 = vrot.lane.b32.xlu0 %v993, 127
        %v1140 = vpop.permute.xlu0 %1139
        %1141 = vrot.lane.b32.xlu0 %v995, 127
        %v1142 = vpop.permute.xlu0 %1141
        %1143 = vrot.lane.b32.xlu0 %v994, 127
        %v1144 = vpop.permute.xlu0 %1143
        %1145 = vrot.lane.b32.xlu0 %v996, 127
        %v1146 = vpop.permute.xlu0 %1145
        %v1147 = vsel %vm552, %v1140, %v1144
        %v1148 = vsel %vm552, %v1142, %v1146
        %v1149 = vsel %vm552, %v1144, %v1140
        %v1150 = vsel %vm552, %v1146, %v1142
        %v1151 = vmul.f32 %v1147, %v558
        %v1152 = vmul.f32 %v1149, %v562
        %v1153 = vmul.f32 %v1148, %v558
        %v1154 = vmul.f32 %v1150, %v562
        %1155 = vset.pattern.permute.xlu0 5
        %1156 = vperm.xlu0 %1155, %v286
        %v1157 = vpop.permute.xlu0 %1156
        %1159 = vset.pattern.permute.xlu0 5
        %1160 = vperm.xlu0 %1159, %v287
        %v1161 = vpop.permute.xlu0 %1160
        %v1163 = vmul.f32 %v1151, %v1157
        %v1164 = vmul.f32 %v1152, %v1157
        %v1165 = vmul.f32 %v1153, %v1161
        %v1166 = vmul.f32 %v1154, %v1161
        %v1167 = vadd.f32 %v1135, %v1163
        %v1168 = vadd.f32 %v1136, %v1164
        %v1169 = vadd.f32 %v1137, %v1165
        %v1170 = vadd.f32 %v1138, %v1166
        %1171 = vrot.lane.b32.xlu0 %v993, 113
        %v1172 = vpop.permute.xlu0 %1171
        %1173 = vrot.lane.b32.xlu0 %v995, 113
        %v1174 = vpop.permute.xlu0 %1173
        %1175 = vrot.lane.b32.xlu0 %v994, 113
        %v1176 = vpop.permute.xlu0 %1175
        %1177 = vrot.lane.b32.xlu0 %v996, 113
        %v1178 = vpop.permute.xlu0 %1177
        %v1179 = vsel %vm577, %v1172, %v1176
        %v1180 = vsel %vm577, %v1174, %v1178
        %v1181 = vsel %vm577, %v1176, %v1172
        %v1182 = vsel %vm577, %v1178, %v1174
        %v1183 = vmul.f32 %v1179, %v583
        %v1184 = vmul.f32 %v1181, %v587
        %v1185 = vmul.f32 %v1180, %v583
        %v1186 = vmul.f32 %v1182, %v587
        %1187 = vset.pattern.permute.xlu0 6
        %1188 = vperm.xlu0 %1187, %v286
        %v1189 = vpop.permute.xlu0 %1188
        %1191 = vset.pattern.permute.xlu0 6
        %1192 = vperm.xlu0 %1191, %v287
        %v1193 = vpop.permute.xlu0 %1192
        %v1195 = vmul.f32 %v1183, %v1189
        %v1196 = vmul.f32 %v1184, %v1189
        %v1197 = vmul.f32 %v1185, %v1193
        %v1198 = vmul.f32 %v1186, %v1193
        %v1199 = vadd.f32 %v1167, %v1195
        %v1200 = vadd.f32 %v1168, %v1196
        %v1201 = vadd.f32 %v1169, %v1197
        %v1202 = vadd.f32 %v1170, %v1198
        %1203 = vrot.lane.b32.xlu0 %v993, 112
        %v1204 = vpop.permute.xlu0 %1203
        %1205 = vrot.lane.b32.xlu0 %v995, 112
        %v1206 = vpop.permute.xlu0 %1205
        %1207 = vrot.lane.b32.xlu0 %v994, 112
        %v1208 = vpop.permute.xlu0 %1207
        %1209 = vrot.lane.b32.xlu0 %v996, 112
        %v1210 = vpop.permute.xlu0 %1209
        %v1211 = vsel %vm602, %v1204, %v1208
        %v1212 = vsel %vm602, %v1206, %v1210
        %v1213 = vsel %vm602, %v1208, %v1204
        %v1214 = vsel %vm602, %v1210, %v1206
        %v1215 = vmul.f32 %v1211, %v608
        %v1216 = vmul.f32 %v1213, %v612
        %v1217 = vmul.f32 %v1212, %v608
        %v1218 = vmul.f32 %v1214, %v612
        %1219 = vset.pattern.permute.xlu0 7
        %1220 = vperm.xlu0 %1219, %v286
        %v1221 = vpop.permute.xlu0 %1220
        %1223 = vset.pattern.permute.xlu0 7
        %1224 = vperm.xlu0 %1223, %v287
        %v1225 = vpop.permute.xlu0 %1224
        %v1227 = vmul.f32 %v1215, %v1221
        %v1228 = vmul.f32 %v1216, %v1221
        %v1229 = vmul.f32 %v1217, %v1225
        %v1230 = vmul.f32 %v1218, %v1225
        %v1231 = vadd.f32 %v1199, %v1227
        %v1232 = vadd.f32 %v1200, %v1228
        %v1233 = vadd.f32 %v1201, %v1229
        %v1234 = vadd.f32 %v1202, %v1230
        %1235 = vrot.lane.b32.xlu0 %v993, 111
        %v1236 = vpop.permute.xlu0 %1235
        %1237 = vrot.lane.b32.xlu0 %v995, 111
        %v1238 = vpop.permute.xlu0 %1237
        %1239 = vrot.lane.b32.xlu0 %v994, 111
        %v1240 = vpop.permute.xlu0 %1239
        %1241 = vrot.lane.b32.xlu0 %v996, 111
        %v1242 = vpop.permute.xlu0 %1241
        %v1243 = vsel %vm627, %v1236, %v1240
        %v1244 = vsel %vm627, %v1238, %v1242
        %v1245 = vsel %vm627, %v1240, %v1236
        %v1246 = vsel %vm627, %v1242, %v1238
        %v1247 = vmul.f32 %v1243, %v633
        %v1248 = vmul.f32 %v1245, %v637
        %v1249 = vmul.f32 %v1244, %v633
        %v1250 = vmul.f32 %v1246, %v637
        %1251 = vset.pattern.permute.xlu0 8
        %1252 = vperm.xlu0 %1251, %v286
        %v1253 = vpop.permute.xlu0 %1252
        %1255 = vset.pattern.permute.xlu0 8
        %1256 = vperm.xlu0 %1255, %v287
        %v1257 = vpop.permute.xlu0 %1256
        %v1259 = vmul.f32 %v1247, %v1253
        %v1260 = vmul.f32 %v1248, %v1253
        %v1261 = vmul.f32 %v1249, %v1257
        %v1262 = vmul.f32 %v1250, %v1257
        %v1263 = vadd.f32 %v1231, %v1259
        %v1264 = vadd.f32 %v1232, %v1260
        %v1265 = vadd.f32 %v1233, %v1261
        %v1266 = vadd.f32 %v1234, %v1262
        %v1267 = vadd.f32 %v1263, %v1265
        %v1268 = vadd.f32 %v1264, %v1266
        %1270 = vset.pattern.permute.xlu0 0
        %1271 = vperm.xlu0 %1270, %v298
        %v1272 = vpop.permute.xlu0 %1271
        %v1274 = vadd.f32 %v1267, %v1272
        %v1275 = vadd.f32 %v1268, %v1272
        %v1276 = vmax.f32 %v1274, 0.0
        %v1277 = vmax.f32 %v1275, 0.0
        %1279 = vset.pattern.permute.xlu0 0
        %1280 = vperm.xlu0 %1279, %v299
        %v1281 = vpop.permute.xlu0 %1280
        %1284 = vset.pattern.permute.xlu0 0
        %1285 = vperm.xlu0 %1284, %v300
        %v1286 = vpop.permute.xlu0 %1285
        %vm1288 = vcmask 261120
        %v1290 = vsel %vm1288, %v281, 0
        %v1293 = vsel %vm1288, %v282, 0
        %1295 = vmatprep.subr.mxu0 0.0
        %1296 = vmatpush1.msra.mxu0 0.0
        %1297 = vmatprep.subr.mxu0 0.0
        %1298 = vmatpush1.msra.mxu0 0.0
        %1299 = vmatprep.subr.mxu0 0.0
        %1300 = vmatpush1.msra.mxu0 0.0
        %1301 = vmatprep.subr.mxu0 0.0
        %1302 = vmatpush1.msra.mxu0 0.0
        %1303 = vmatprep.subr.mxu0 0.0
        %1304 = vmatpush1.msra.mxu0 0.0
        %1305 = vmatprep.subr.mxu0 0.0
        %1306 = vmatpush1.msra.mxu0 0.0
        %1307 = vmatprep.subr.mxu0 0.0
        %1308 = vmatpush1.msra.mxu0 0.0
        %1309 = vmatprep.subr.mxu0 0.0
        %1310 = vmatpush1.msra.mxu0 0.0
        %1311 = vmatprep.subr.mxu0 0.0
        %1312 = vmatpush1.msra.mxu0 0.0
        %1313 = vmatprep.subr.mxu0 0.0
        %1314 = vmatpush1.msra.mxu0 0.0
        %1315 = vmatprep.subr.mxu0 0.0
        %1316 = vmatpush1.msra.mxu0 0.0
        %1317 = vmatprep.subr.mxu0 0.0
        %1318 = vmatpush1.msra.mxu0 0.0
        %1319 = vmatprep.subr.mxu0 %v1277
        %1320 = vmatpush1.msra.mxu0 %v1276
        %1321 = vmatprep.subr.mxu0 %v980
        %1322 = vmatpush1.msra.mxu0 %v979
        %1323 = vmatprep.subr.mxu0 %v656
        %1324 = vmatpush1.msra.mxu0 %v655
        %1325 = vmatprep.subr.mxu0 %v432
        %1326 = vmatpush1.msra.mxu0 %v431
        %1327 = vmatprep.subr.mxu0 0.0
        %1328 = vmatpush2.msra.mxu0 0.0
        %1329 = vmatprep.subr.mxu0 0.0
        %1330 = vmatpush2.msra.mxu0 0.0
        %1331 = vmatprep.subr.mxu0 0.0
        %1332 = vmatpush2.msra.mxu0 0.0
        %1333 = vmatprep.subr.mxu0 0.0
        %1334 = vmatpush2.msra.mxu0 0.0
        %1335 = vmatprep.subr.mxu0 0.0
        %1336 = vmatpush2.msra.mxu0 0.0
        %1337 = vmatprep.subr.mxu0 0.0
        %1338 = vmatpush2.msra.mxu0 0.0
        %1339 = vmatprep.subr.mxu0 0.0
        %1340 = vmatpush2.msra.mxu0 0.0
        %1341 = vmatprep.subr.mxu0 0.0
        %1342 = vmatpush2.msra.mxu0 0.0
        %1343 = vmatprep.subr.mxu0 0.0
        %1344 = vmatpush2.msra.mxu0 0.0
        %1345 = vmatprep.subr.mxu0 0.0
        %1346 = vmatpush2.msra.mxu0 0.0
        %1347 = vmatprep.subr.mxu0 0.0
        %1348 = vmatpush2.msra.mxu0 0.0
        %1349 = vmatprep.subr.mxu0 0.0
        %1350 = vmatpush2.msra.mxu0 0.0
        %1351 = vmatprep.subr.mxu0 0.0
        %1352 = vmatpush2.msra.mxu0 0.0
        %1353 = vmatprep.subr.mxu0 0.0
        %1354 = vmatpush2.msra.mxu0 0.0
        %1355 = vmatprep.subr.mxu0 0.0
        %1356 = vmatpush2.msra.mxu0 0.0
        %1357 = vmatprep.subr.mxu0 0.0
        %1358 = vmatpush2.msra.mxu0 0.0
        %1359 = vmatprep.mubr.f32.mxu0 0.0
        %1360 = vmatmul.mubr.f32.gmra.mxu0 %v1290
        %v1361 = vpop.f32.mrf.mxu0
        %v1362 = vadd.f32 %v1281, %v1361
        %v1363 = vpop.f32.mrf.mxu0
        %v1364 = vadd.f32 %v1281, %v1363
        %1365 = vmatprep.mubr.f32.mxu0 0.0
        %1366 = vmatmul.mubr.f32.gmra.mxu0 %v1293
        %v1367 = vpop.f32.mrf.mxu0
        %v1368 = vadd.f32 %v1286, %v1367
        %v1369 = vpop.f32.mrf.mxu0
        %v1370 = vadd.f32 %v1286, %v1369
        %1371 = vdwg.mxu0
        %v1372 = vmax.f32 %v1362, 0.0
        %v1373 = vmax.f32 %v1364, 0.0
        %v1374 = vmax.f32 %v1368, 0.0
        %v1375 = vmax.f32 %v1370, 0.0
        %v1376 = vmax.f32 %v305, %v306
        %1377 = vmax.xlane.f32.xlu0 %v1376
        %v1378 = vpop.xlane.xlu0 %1377
        %v1379 = vmax.f32 %v307, %v308
        %1380 = vmax.xlane.f32.xlu0 %v1379
        %v1381 = vpop.xlane.xlu0 %1380
        %v1382 = vmul.f32 %v301, %v1378
        %v1383 = vmul.f32 %v302, %v1381
        %vm1384 = vcmask 7168
        %v1385 = vsel %vm1384, %v1382, 0.0
        %v1386 = vsel %vm1384, %v1383, 0.0
        %v1387 = vadd.f32 %v1385, %v1386
        %v1388 = vrot.slane %v1387, 4
        %v1389 = vadd.f32 %v1387, %v1388
        %v1390 = vrot.slane %v1389, 2
        %v1391 = vadd.f32 %v1389, %v1390
        %v1392 = vrot.slane %v1391, 1
        %v1393 = vadd.f32 %v1391, %v1392
        %v1394 = vmax.f32 %v1393, 0.0
        %v1395 = vmul.f32 %v303, %v1394
        %v1396 = vmul.f32 %v304, %v1394
        %v1397 = vadd.f32 %v1395, 0.0
        %v1398 = vadd.f32 %v1396, 0.0
        %v1399 = vsub.f32 0.0, %v1397
        %v1400 = vsub.f32 0.0, %v1398
        %v1401 = vmul.f32 %v1399, 1.442695
        %v1402 = vpow.pop %v1401
        %v1403 = vmul.f32 %v1400, 1.442695
        %v1404 = vpow.pop %v1403
        %v1405 = vadd.f32 %v1402, 1.0
        %v1406 = vadd.f32 %v1404, 1.0
        %v1407 = vrcp.pop %v1405
        %v1408 = vrcp.pop %v1406
        %1410 = vset.pattern.permute.xlu0 0
        %1411 = vperm.xlu0 %1410, %v1407
        %v1412 = vpop.permute.xlu0 %1411
        %1415 = vset.pattern.permute.xlu0 0
        %1416 = vperm.xlu0 %1415, %v1408
        %v1417 = vpop.permute.xlu0 %1416
        %v1419 = vmul.f32 %v1372, %v1412
        %v1420 = vmul.f32 %v1373, %v1412
        %v1421 = vmul.f32 %v1374, %v1417
        %v1422 = vmul.f32 %v1375, %v1417
        %1423 = vst [vmem:[%s271] sm:$0xff] %v1419
        %1424 = vst [vmem:[%s271 + $0x8] sm:$0xff] %v1420
        %1425 = vst [vmem:[%s271 + $0x10] sm:$0xff] %v1421
        %1426 = vst [vmem:[%s271 + $0x18] sm:$0xff] %v1422
        %s1427 = sand.u32 %s181, 1
        %s1428 = scalar_lea.sflag [#allocation3], %s1427
        %s1429 = sand.u32 %s181, 1
        %s1430 = smul.addr %s1429, 32
        %s1431 = scalar_lea.vmem [#allocation2], %s1430
        // Predicated region
        $region49: #{tpu_custom_call.1} parent=47 // pred_check
          %p1432 = pneg %p191
        $region50: #{tpu_custom_call.1} parent=47 // pred_check_branch
          %1434 = sbr.rel (%p1432) target = $region52
        $region51: #{tpu_custom_call.1} parent=47 // pred_region
          %s1436 = ssub.s32 512, 512
          %1437 = vsyncadd %s1428, %s1436
          %s1438 = smul.addr %s21, 4
          %s1439 = smul.addr %s1438, 128
          %s1440 = scalar_lea.hbm %s7, %s1439
          %s1441 = sshll.u32 %s1431, 4
          %s1442 = int_to_ptr.vmem [resolvable:$true] %s1441
          %1447 = dma.vmem_to_hbm [thread:$0]  %s1442, 512, %s1440, %s1428, 256, 256, 16
        $region52: #{tpu_custom_call.1} parent=47 // pred_fallthru
          _
      $region48: #{tpu_custom_call.1} parent=5 // pred_fallthru
        _
      %p1448 = scmp.le.s32.totalorder 2, %s16
      // Predicated region
      $region53: #{tpu_custom_call.1} parent=5 // pred_check
        %p1449 = pneg %p1448
      $region54: #{tpu_custom_call.1} parent=5 // pred_check_branch
        %1451 = sbr.rel (%p1449) target = $region56
      $region55: #{tpu_custom_call.1} parent=5 // pred_region
        %s1452 = ssub.s32 %s16, 2
        // Predicated region
        $region57: #{tpu_custom_call.1} parent=55 // pred_check
          %p1453 = pneg %p197
        $region58: #{tpu_custom_call.1} parent=55 // pred_check_branch
          %1455 = sbr.rel (%p1453) target = $region60
        $region59: #{tpu_custom_call.1} parent=55 // pred_region
          %s1456 = sand.u32 %s182, 1
          %s1457 = scalar_lea.sflag [#allocation3], %s1456
          %s1458 = sand.u32 %s182, 1
          %s1459 = smul.addr %s1458, 32
          %s1460 = scalar_lea.vmem [#allocation2], %s1459
          %1461 = dma.done %s1457, 512
        $region60: #{tpu_custom_call.1} parent=55 // pred_fallthru
          _
      $region56: #{tpu_custom_call.1} parent=5 // pred_fallthru
        _
    $region6: #{tpu_custom_call.1} parent=1 // loop_footer
      %s20 = sadd.s32 1, %s16
    $region7: #{tpu_custom_call.1} parent=1 // loop_footer_branch
      %15 = sbr.rel target = $region3
    $region8: #{tpu_custom_call.1} parent=1 // loop_exit
      _
    %1462 = vsyncpa [#allocation3], 1
    %s1463 = scalar_lea.sflag [#allocation3], 1
    %1464 = vsyncpa %s1463, 1

</llo_original>
